<compile_context>
chip_gen: v7x
topology: tpu7x:2x2x1
jax: 0.10.0
libtpu: 0.0.40
codegen_flags: <defaults>
</compile_context>

<pallas_src>
import jax
import jax.numpy as jnp
from jax.experimental import pallas as pl
from jax.experimental.pallas import tpu as pltpu


def custom_rnn_kernel(x_ref, h00_ref, c00_ref, h01_ref, c01_ref,
                      enc_w_ref, enc_b_ref,
                      wih0_ref, whh0_ref, b0_ref,
                      wih1_ref, whh1_ref, b1_ref,
                      dec_w_ref, dec_b_ref,
                      out_ref, hn0_ref, cn0_ref, hn1_ref, cn1_ref,
                      gx_scratch, h1_scratch):
    B, H = h00_ref.shape
    SB = x_ref.shape[0]
    S = SB // B
    bf16 = jnp.bfloat16

    # ---- Hoisted (off the serial recurrence): encoder + layer-0 input projection ----
    # One (S*B, n_source) @ (n_source, n_input) and one (S*B, n_input) @ (n_input, 4H),
    # bf16 operands, f32 accumulation.
    emb = jnp.dot(x_ref[...], enc_w_ref[...],
                  preferred_element_type=jnp.float32) + enc_b_ref[...]
    gates_x0 = jnp.dot(emb.astype(bf16), wih0_ref[...],
                       preferred_element_type=jnp.float32) + b0_ref[...]

    # Stage per-step input-gate slabs into a tile-aligned (S, B, 4H) scratch once,
    # so the time loop does aligned gx_scratch[t] loads (no sublane extraction on
    # the operand feeding the recurrent add). Done before the recurrence -> off chain.
    for t in range(S):
        gx_scratch[t] = gates_x0[t * B:(t + 1) * B, :]

    # Loop-invariant weights / hoisted bias broadcast (small at H=32, fits in vregs).
    whh0 = whh0_ref[...]
    wih1 = wih1_ref[...]
    whh1 = whh1_ref[...]
    b1_b = jnp.broadcast_to(b1_ref[...], (B, 4 * H))

    def gates_to_hc(gates, c):
        # One sigmoid and one tanh over the full (B, 4H) vreg, then lane slices.
        # (f32 elementwise math on all generations.)
        sig = jax.nn.sigmoid(gates)
        th = jnp.tanh(gates)
        i = sig[:, 0 * H:1 * H]
        f = sig[:, 1 * H:2 * H]
        g = th[:, 2 * H:3 * H]
        o = sig[:, 3 * H:4 * H]
        c_new = f * c + i * g
        h_new = o * jnp.tanh(c_new)
        return h_new, c_new

    h0 = h00_ref[...]
    c0 = c00_ref[...]
    h1 = h01_ref[...]
    c1 = c01_ref[...]

    # Fully unrolled time loop (S static). Layer-1's W_hh1 matmul only depends on the
    # previous step's h1, so it overlaps with the layer-0 recurrent matmul + gate chain.
    for t in range(S):
        # layer 1 recurrent term (independent of this step's layer-0 output)
        rec1 = jnp.dot(h1.astype(bf16), whh1, preferred_element_type=jnp.float32)
        # layer 0: precomputed, tile-aligned input gates + recurrent projection
        gates0 = gx_scratch[t] + jnp.dot(h0.astype(bf16), whh0,
                                         preferred_element_type=jnp.float32)
        h0, c0 = gates_to_hc(gates0, c0)
        # layer 1 (inter-layer dropout = identity in eval)
        gates1 = jnp.dot(h0.astype(bf16), wih1,
                         preferred_element_type=jnp.float32) + rec1 + b1_b
        h1, c1 = gates_to_hc(gates1, c1)
        # stash h1 for the hoisted decoder (static-index VMEM store, off the h/c chain)
        h1_scratch[t * B:(t + 1) * B, :] = h1

    # ---- Hoisted decoder: one (S*B, H) @ (H, 128) matmul, lane-dense single store ----
    out_ref[...] = jnp.dot(h1_scratch[...].astype(bf16), dec_w_ref[...],
                           preferred_element_type=jnp.float32) + dec_b_ref[...]

    hn0_ref[...] = h0
    cn0_ref[...] = c0
    hn1_ref[...] = h1
    cn1_ref[...] = c1


@jax.jit
def custom_rnn_forward(x, h0, c0, params):
    """x: (S, B, n_source); h0/c0: (2, B, H). Returns (decoded, (h_n, c_n))."""
    (enc_w, enc_b, wih0, whh0, b0, wih1, whh1, b1, dec_w, dec_b) = params
    S, B, n_source = x.shape
    H = h0.shape[-1]
    n_target = dec_w.shape[-1]
    bf16 = jnp.bfloat16

    # Flatten time*batch for the hoisted big matmuls; bf16-cast all MXU operands.
    x2 = x.reshape(S * B, n_source).astype(bf16)
    enc_w_c = enc_w.astype(bf16)
    wih0_c = wih0.astype(bf16)
    whh0_c = whh0.astype(bf16)
    wih1_c = wih1.astype(bf16)
    whh1_c = whh1.astype(bf16)

    # Lane-dense decoder: zero-pad the output dim to a multiple of 128 lanes.
    n_t_pad = ((n_target + 127) // 128) * 128
    dec_w_p = jnp.zeros((H, n_t_pad), bf16).at[:, :n_target].set(dec_w.astype(bf16))
    dec_b_p = jnp.zeros((1, n_t_pad), jnp.float32).at[:, :n_target].set(dec_b)

    vmem = pl.BlockSpec(memory_space=pltpu.MemorySpace.VMEM)
    n_in = 15
    out_shapes = (
        jax.ShapeDtypeStruct((S * B, n_t_pad), jnp.float32),   # decoded (flat, padded)
        jax.ShapeDtypeStruct((B, H), jnp.float32),              # h_n layer0
        jax.ShapeDtypeStruct((B, H), jnp.float32),              # c_n layer0
        jax.ShapeDtypeStruct((B, H), jnp.float32),              # h_n layer1
        jax.ShapeDtypeStruct((B, H), jnp.float32),              # c_n layer1
    )
    decoded_flat, hn0, cn0, hn1, cn1 = pl.pallas_call(
        custom_rnn_kernel,
        out_shape=out_shapes,
        in_specs=[vmem] * n_in,
        out_specs=tuple([vmem] * len(out_shapes)),
        scratch_shapes=[pltpu.VMEM((S, B, 4 * H), jnp.float32),   # tile-aligned gx[t]
                        pltpu.VMEM((S * B, H), jnp.float32)],      # h1 history for decoder
    )(x2, h0[0], c0[0], h0[1], c0[1],
      enc_w_c, enc_b, wih0_c, whh0_c, b0, wih1_c, whh1_c, b1, dec_w_p, dec_b_p)

    decoded = decoded_flat[:, :n_target].reshape(S, B, n_target)
    h_n = jnp.stack([hn0, hn1], axis=0)
    c_n = jnp.stack([cn0, cn1], axis=0)
    return decoded, (h_n, c_n)


def _lstm_cell_ref(x_t, h, c, wih_T, whh_T, b, H):
    # PyTorch gate order: i, f, g, o
    gates = x_t @ wih_T + h @ whh_T + b
    i = jax.nn.sigmoid(gates[:, 0 * H:1 * H])
    f = jax.nn.sigmoid(gates[:, 1 * H:2 * H])
    g = jnp.tanh(gates[:, 2 * H:3 * H])
    o = jax.nn.sigmoid(gates[:, 3 * H:4 * H])
    c_new = f * c + i * g
    h_new = o * jnp.tanh(c_new)
    return h_new, c_new


def reference_forward(x, h0, c0, params):
    """Pure-JAX f32 reference (same math, python time loop)."""
    (enc_w, enc_b, wih0, whh0, b0, wih1, whh1, b1, dec_w, dec_b) = params
    H = h0.shape[-1]
    h_0, c_0, h_1, c_1 = h0[0], c0[0], h0[1], c0[1]
    outs = []
    for t in range(x.shape[0]):
        emb = x[t] @ enc_w + enc_b
        h_0, c_0 = _lstm_cell_ref(emb, h_0, c_0, wih0, whh0, b0, H)
        h_1, c_1 = _lstm_cell_ref(h_0, h_1, c_1, wih1, whh1, b1, H)
        outs.append(h_1 @ dec_w + dec_b)
    decoded = jnp.stack(outs, axis=0)
    return decoded, (jnp.stack([h_0, h_1]), jnp.stack([c_0, c_1]))


def init_params(key, n_source, n_input, n_hidden, n_target):
    """Deterministic init mirroring the PyTorch module's shapes.
    Weights are pre-transposed so kernel matmuls are (rows, in) @ (in, out)."""
    ks = jax.random.split(key, 12)
    u = lambda k, shape, r: jax.random.uniform(k, shape, jnp.float32, -r, r)
    H = n_hidden
    # encoder: nn.Linear(n_source, n_input), weight uniform(-0.1, 0.1)
    enc_w = u(ks[0], (n_source, n_input), 0.1)
    enc_b = u(ks[1], (1, n_input), 1.0 / jnp.sqrt(n_source))
    # LSTM layer 0: W_ih (4H, n_input) -> transposed (n_input, 4H)
    r = 1.0 / float(jnp.sqrt(float(H)))
    wih0 = u(ks[2], (n_input, 4 * H), r)
    whh0 = u(ks[3], (H, 4 * H), r)
    b0 = u(ks[4], (1, 4 * H), r) + u(ks[5], (1, 4 * H), r)   # b_ih + b_hh
    # LSTM layer 1: input is H
    wih1 = u(ks[6], (H, 4 * H), r)
    whh1 = u(ks[7], (H, 4 * H), r)
    b1 = u(ks[8], (1, 4 * H), r) + u(ks[9], (1, 4 * H), r)
    # decoder: nn.Linear(n_hidden, n_target), weight uniform(-0.1, 0.1)
    dec_w = u(ks[10], (H, n_target), 0.1)
    dec_b = u(ks[11], (1, n_target), 1.0 / jnp.sqrt(H))
    return (enc_w, enc_b, wih0, whh0, b0, wih1, whh1, b1, dec_w, dec_b)


if __name__ == "__main__":
    # Small shapes implied by forward: seq=8, batch=2, n_source=16,
    # n_input=32, n_hidden=32, n_layers=2, n_target=10 (rnn_type='LSTM').
    S, B = 8, 2
    n_source, n_input, n_hidden, n_target = 16, 32, 32, 10
    n_layers = 2

    key = jax.random.PRNGKey(0)
    kx, kp = jax.random.split(key)
    x = jax.random.normal(kx, (S, B, n_source), jnp.float32)
    h0 = jnp.zeros((n_layers, B, n_hidden), jnp.float32)   # init_hidden
    c0 = jnp.zeros((n_layers, B, n_hidden), jnp.float32)
    params = init_params(kp, n_source, n_input, n_hidden, n_target)

    decoded, (h_n, c_n) = custom_rnn_forward(x, h0, c0, params)
    jax.block_until_ready((decoded, h_n, c_n))

    ref_dec, (ref_h, ref_c) = reference_forward(x, h0, c0, params)
    assert decoded.shape == (S, B, n_target)
    assert h_n.shape == (n_layers, B, n_hidden)
    assert c_n.shape == (n_layers, B, n_hidden)
    # Tolerances loosened vs the pure-f32 reference: kernel uses bf16 MXU operands
    # (f32 accumulation + f32 gate math), per the perf review.
    assert jnp.allclose(decoded, ref_dec, atol=2e-2, rtol=2e-2)
    assert jnp.allclose(h_n, ref_h, atol=2e-2, rtol=2e-2)
    assert jnp.allclose(c_n, ref_c, atol=2e-2, rtol=2e-2)

    print("KERNEL_OK")
</pallas_src>

<mosaic_0001>
module attributes {stable_mosaic.version = 11 : i64} {
  func.func @custom_rnn_kernel(%arg0: memref<16x16xbf16, #tpu.memory_space<vmem>>, %arg1: memref<2x32xf32, #tpu.memory_space<vmem>>, %arg2: memref<2x32xf32, #tpu.memory_space<vmem>>, %arg3: memref<2x32xf32, #tpu.memory_space<vmem>>, %arg4: memref<2x32xf32, #tpu.memory_space<vmem>>, %arg5: memref<16x32xbf16, #tpu.memory_space<vmem>>, %arg6: memref<1x32xf32, #tpu.memory_space<vmem>>, %arg7: memref<32x128xbf16, #tpu.memory_space<vmem>>, %arg8: memref<32x128xbf16, #tpu.memory_space<vmem>>, %arg9: memref<1x128xf32, #tpu.memory_space<vmem>>, %arg10: memref<32x128xbf16, #tpu.memory_space<vmem>>, %arg11: memref<32x128xbf16, #tpu.memory_space<vmem>>, %arg12: memref<1x128xf32, #tpu.memory_space<vmem>>, %arg13: memref<32x128xbf16, #tpu.memory_space<vmem>>, %arg14: memref<1x128xf32, #tpu.memory_space<vmem>>, %arg15: memref<16x128xf32, #tpu.memory_space<vmem>>, %arg16: memref<2x32xf32, #tpu.memory_space<vmem>>, %arg17: memref<2x32xf32, #tpu.memory_space<vmem>>, %arg18: memref<2x32xf32, #tpu.memory_space<vmem>>, %arg19: memref<2x32xf32, #tpu.memory_space<vmem>>, %arg20: memref<8x2x128xf32, #tpu.memory_space<vmem>>, %arg21: memref<16x32xf32, #tpu.memory_space<vmem>>) attributes {dimension_semantics = [], scalar_prefetch = 0 : i64, scratch_operands = 2 : i64, tpu.core_type = #tpu.core_type<tc>} {
    %c0 = arith.constant 0 : index
    %c0_0 = arith.constant 0 : index
    %0 = vector.load %arg0[%c0, %c0_0] : memref<16x16xbf16, #tpu.memory_space<vmem>>, vector<16x16xbf16>
    %c0_1 = arith.constant 0 : index
    %c0_2 = arith.constant 0 : index
    %1 = vector.load %arg5[%c0_1, %c0_2] : memref<16x32xbf16, #tpu.memory_space<vmem>>, vector<16x32xbf16>
    %cst = arith.constant dense<0.000000e+00> : vector<16x32xf32>
    %2 = tpu.matmul %0, %1, %cst {dimension_numbers = #tpu.dot_dimension_numbers<[1], [0], [0], [1], [0, 0, 1, 1], [], []>} : vector<16x16xbf16>, vector<16x32xbf16>, vector<16x32xf32> -> vector<16x32xf32>
    %c0_3 = arith.constant 0 : index
    %c0_4 = arith.constant 0 : index
    %3 = vector.load %arg6[%c0_3, %c0_4] : memref<1x32xf32, #tpu.memory_space<vmem>>, vector<1x32xf32>
    %4 = vector.broadcast %3 : vector<1x32xf32> to vector<16x32xf32>
    %5 = arith.addf %2, %4 : vector<16x32xf32>
    %6 = arith.truncf %5 : vector<16x32xf32> to vector<16x32xbf16>
    %c0_5 = arith.constant 0 : index
    %c0_6 = arith.constant 0 : index
    %7 = vector.load %arg7[%c0_5, %c0_6] : memref<32x128xbf16, #tpu.memory_space<vmem>>, vector<32x128xbf16>
    %cst_7 = arith.constant dense<0.000000e+00> : vector<16x128xf32>
    %8 = tpu.matmul %6, %7, %cst_7 {dimension_numbers = #tpu.dot_dimension_numbers<[1], [0], [0], [1], [0, 0, 1, 1], [], []>} : vector<16x32xbf16>, vector<32x128xbf16>, vector<16x128xf32> -> vector<16x128xf32>
    %c0_8 = arith.constant 0 : index
    %c0_9 = arith.constant 0 : index
    %9 = vector.load %arg9[%c0_8, %c0_9] : memref<1x128xf32, #tpu.memory_space<vmem>>, vector<1x128xf32>
    %10 = vector.broadcast %9 : vector<1x128xf32> to vector<16x128xf32>
    %11 = arith.addf %8, %10 : vector<16x128xf32>
    %12 = vector.extract_strided_slice %11 {offsets = [0, 0], sizes = [2, 128], strides = [1, 1]} : vector<16x128xf32> to vector<2x128xf32>
    %c0_10 = arith.constant 0 : index
    %c0_11 = arith.constant 0 : index
    %c0_12 = arith.constant 0 : index
    %13 = vector.load %arg20[%c0_10, %c0_11, %c0_12] : memref<8x2x128xf32, #tpu.memory_space<vmem>>, vector<1x2x128xf32>
    %14 = vector.shape_cast %13 : vector<1x2x128xf32> to vector<2x128xf32>
    %15 = vector.shape_cast %12 : vector<2x128xf32> to vector<1x2x128xf32>
    tpu.vector_store %arg20[%c0_10, %c0_11, %c0_12], %15 {strides = array<i32>} : memref<8x2x128xf32, #tpu.memory_space<vmem>>, vector<1x2x128xf32>,
    %16 = vector.extract_strided_slice %11 {offsets = [2, 0], sizes = [2, 128], strides = [1, 1]} : vector<16x128xf32> to vector<2x128xf32>
    %c1 = arith.constant 1 : index
    %c0_13 = arith.constant 0 : index
    %c0_14 = arith.constant 0 : index
    %17 = vector.load %arg20[%c1, %c0_13, %c0_14] : memref<8x2x128xf32, #tpu.memory_space<vmem>>, vector<1x2x128xf32>
    %18 = vector.shape_cast %17 : vector<1x2x128xf32> to vector<2x128xf32>
    %19 = vector.shape_cast %16 : vector<2x128xf32> to vector<1x2x128xf32>
    tpu.vector_store %arg20[%c1, %c0_13, %c0_14], %19 {strides = array<i32>} : memref<8x2x128xf32, #tpu.memory_space<vmem>>, vector<1x2x128xf32>,
    %20 = vector.extract_strided_slice %11 {offsets = [4, 0], sizes = [2, 128], strides = [1, 1]} : vector<16x128xf32> to vector<2x128xf32>
    %c2 = arith.constant 2 : index
    %c0_15 = arith.constant 0 : index
    %c0_16 = arith.constant 0 : index
    %21 = vector.load %arg20[%c2, %c0_15, %c0_16] : memref<8x2x128xf32, #tpu.memory_space<vmem>>, vector<1x2x128xf32>
    %22 = vector.shape_cast %21 : vector<1x2x128xf32> to vector<2x128xf32>
    %23 = vector.shape_cast %20 : vector<2x128xf32> to vector<1x2x128xf32>
    tpu.vector_store %arg20[%c2, %c0_15, %c0_16], %23 {strides = array<i32>} : memref<8x2x128xf32, #tpu.memory_space<vmem>>, vector<1x2x128xf32>,
    %24 = vector.extract_strided_slice %11 {offsets = [6, 0], sizes = [2, 128], strides = [1, 1]} : vector<16x128xf32> to vector<2x128xf32>
    %c3 = arith.constant 3 : index
    %c0_17 = arith.constant 0 : index
    %c0_18 = arith.constant 0 : index
    %25 = vector.load %arg20[%c3, %c0_17, %c0_18] : memref<8x2x128xf32, #tpu.memory_space<vmem>>, vector<1x2x128xf32>
    %26 = vector.shape_cast %25 : vector<1x2x128xf32> to vector<2x128xf32>
    %27 = vector.shape_cast %24 : vector<2x128xf32> to vector<1x2x128xf32>
    tpu.vector_store %arg20[%c3, %c0_17, %c0_18], %27 {strides = array<i32>} : memref<8x2x128xf32, #tpu.memory_space<vmem>>, vector<1x2x128xf32>,
    %28 = vector.extract_strided_slice %11 {offsets = [8, 0], sizes = [2, 128], strides = [1, 1]} : vector<16x128xf32> to vector<2x128xf32>
    %c4 = arith.constant 4 : index
    %c0_19 = arith.constant 0 : index
    %c0_20 = arith.constant 0 : index
    %29 = vector.load %arg20[%c4, %c0_19, %c0_20] : memref<8x2x128xf32, #tpu.memory_space<vmem>>, vector<1x2x128xf32>
    %30 = vector.shape_cast %29 : vector<1x2x128xf32> to vector<2x128xf32>
    %31 = vector.shape_cast %28 : vector<2x128xf32> to vector<1x2x128xf32>
    tpu.vector_store %arg20[%c4, %c0_19, %c0_20], %31 {strides = array<i32>} : memref<8x2x128xf32, #tpu.memory_space<vmem>>, vector<1x2x128xf32>,
    %32 = vector.extract_strided_slice %11 {offsets = [10, 0], sizes = [2, 128], strides = [1, 1]} : vector<16x128xf32> to vector<2x128xf32>
    %c5 = arith.constant 5 : index
    %c0_21 = arith.constant 0 : index
    %c0_22 = arith.constant 0 : index
    %33 = vector.load %arg20[%c5, %c0_21, %c0_22] : memref<8x2x128xf32, #tpu.memory_space<vmem>>, vector<1x2x128xf32>
    %34 = vector.shape_cast %33 : vector<1x2x128xf32> to vector<2x128xf32>
    %35 = vector.shape_cast %32 : vector<2x128xf32> to vector<1x2x128xf32>
    tpu.vector_store %arg20[%c5, %c0_21, %c0_22], %35 {strides = array<i32>} : memref<8x2x128xf32, #tpu.memory_space<vmem>>, vector<1x2x128xf32>,
    %36 = vector.extract_strided_slice %11 {offsets = [12, 0], sizes = [2, 128], strides = [1, 1]} : vector<16x128xf32> to vector<2x128xf32>
    %c6 = arith.constant 6 : index
    %c0_23 = arith.constant 0 : index
    %c0_24 = arith.constant 0 : index
    %37 = vector.load %arg20[%c6, %c0_23, %c0_24] : memref<8x2x128xf32, #tpu.memory_space<vmem>>, vector<1x2x128xf32>
    %38 = vector.shape_cast %37 : vector<1x2x128xf32> to vector<2x128xf32>
    %39 = vector.shape_cast %36 : vector<2x128xf32> to vector<1x2x128xf32>
    tpu.vector_store %arg20[%c6, %c0_23, %c0_24], %39 {strides = array<i32>} : memref<8x2x128xf32, #tpu.memory_space<vmem>>, vector<1x2x128xf32>,
    %40 = vector.extract_strided_slice %11 {offsets = [14, 0], sizes = [2, 128], strides = [1, 1]} : vector<16x128xf32> to vector<2x128xf32>
    %c7 = arith.constant 7 : index
    %c0_25 = arith.constant 0 : index
    %c0_26 = arith.constant 0 : index
    %41 = vector.load %arg20[%c7, %c0_25, %c0_26] : memref<8x2x128xf32, #tpu.memory_space<vmem>>, vector<1x2x128xf32>
    %42 = vector.shape_cast %41 : vector<1x2x128xf32> to vector<2x128xf32>
    %43 = vector.shape_cast %40 : vector<2x128xf32> to vector<1x2x128xf32>
    tpu.vector_store %arg20[%c7, %c0_25, %c0_26], %43 {strides = array<i32>} : memref<8x2x128xf32, #tpu.memory_space<vmem>>, vector<1x2x128xf32>,
    %c0_27 = arith.constant 0 : index
    %c0_28 = arith.constant 0 : index
    %44 = vector.load %arg8[%c0_27, %c0_28] : memref<32x128xbf16, #tpu.memory_space<vmem>>, vector<32x128xbf16>
    %c0_29 = arith.constant 0 : index
    %c0_30 = arith.constant 0 : index
    %45 = vector.load %arg10[%c0_29, %c0_30] : memref<32x128xbf16, #tpu.memory_space<vmem>>, vector<32x128xbf16>
    %c0_31 = arith.constant 0 : index
    %c0_32 = arith.constant 0 : index
    %46 = vector.load %arg11[%c0_31, %c0_32] : memref<32x128xbf16, #tpu.memory_space<vmem>>, vector<32x128xbf16>
    %c0_33 = arith.constant 0 : index
    %c0_34 = arith.constant 0 : index
    %47 = vector.load %arg12[%c0_33, %c0_34] : memref<1x128xf32, #tpu.memory_space<vmem>>, vector<1x128xf32>
    %48 = vector.shape_cast %47 : vector<1x128xf32> to vector<1x128xf32>
    %49 = vector.broadcast %48 : vector<1x128xf32> to vector<2x128xf32>
    %c0_35 = arith.constant 0 : index
    %c0_36 = arith.constant 0 : index
    %50 = vector.load %arg1[%c0_35, %c0_36] : memref<2x32xf32, #tpu.memory_space<vmem>>, vector<2x32xf32>
    %c0_37 = arith.constant 0 : index
    %c0_38 = arith.constant 0 : index
    %51 = vector.load %arg2[%c0_37, %c0_38] : memref<2x32xf32, #tpu.memory_space<vmem>>, vector<2x32xf32>
    %c0_39 = arith.constant 0 : index
    %c0_40 = arith.constant 0 : index
    %52 = vector.load %arg3[%c0_39, %c0_40] : memref<2x32xf32, #tpu.memory_space<vmem>>, vector<2x32xf32>
    %c0_41 = arith.constant 0 : index
    %c0_42 = arith.constant 0 : index
    %53 = vector.load %arg4[%c0_41, %c0_42] : memref<2x32xf32, #tpu.memory_space<vmem>>, vector<2x32xf32>
    %54 = arith.truncf %52 : vector<2x32xf32> to vector<2x32xbf16>
    %cst_43 = arith.constant dense<0.000000e+00> : vector<2x128xf32>
    %55 = tpu.matmul %54, %46, %cst_43 {dimension_numbers = #tpu.dot_dimension_numbers<[1], [0], [0], [1], [0, 0, 1, 1], [], []>} : vector<2x32xbf16>, vector<32x128xbf16>, vector<2x128xf32> -> vector<2x128xf32>
    %c0_44 = arith.constant 0 : index
    %c0_45 = arith.constant 0 : index
    %c0_46 = arith.constant 0 : index
    %56 = vector.load %arg20[%c0_44, %c0_45, %c0_46] : memref<8x2x128xf32, #tpu.memory_space<vmem>>, vector<1x2x128xf32>
    %57 = vector.shape_cast %56 : vector<1x2x128xf32> to vector<2x128xf32>
    %58 = arith.truncf %50 : vector<2x32xf32> to vector<2x32xbf16>
    %cst_47 = arith.constant dense<0.000000e+00> : vector<2x128xf32>
    %59 = tpu.matmul %58, %44, %cst_47 {dimension_numbers = #tpu.dot_dimension_numbers<[1], [0], [0], [1], [0, 0, 1, 1], [], []>} : vector<2x32xbf16>, vector<32x128xbf16>, vector<2x128xf32> -> vector<2x128xf32>
    %60 = arith.addf %57, %59 : vector<2x128xf32>
    %61 = arith.negf %60 : vector<2x128xf32>
    %62 = math.exp %61 : vector<2x128xf32>
    %cst_48 = arith.constant 1.000000e+00 : f32
    %63 = vector.broadcast %cst_48 : f32 to vector<2x128xf32>
    %64 = arith.addf %63, %62 : vector<2x128xf32>
    %65 = arith.divf %63, %64 : vector<2x128xf32>
    %66 = math.tanh %60 : vector<2x128xf32>
    %67 = vector.extract_strided_slice %65 {offsets = [0, 0], sizes = [2, 32], strides = [1, 1]} : vector<2x128xf32> to vector<2x32xf32>
    %68 = vector.extract_strided_slice %65 {offsets = [0, 32], sizes = [2, 32], strides = [1, 1]} : vector<2x128xf32> to vector<2x32xf32>
    %69 = vector.extract_strided_slice %66 {offsets = [0, 64], sizes = [2, 32], strides = [1, 1]} : vector<2x128xf32> to vector<2x32xf32>
    %70 = vector.extract_strided_slice %65 {offsets = [0, 96], sizes = [2, 32], strides = [1, 1]} : vector<2x128xf32> to vector<2x32xf32>
    %71 = arith.mulf %68, %51 : vector<2x32xf32>
    %72 = arith.mulf %67, %69 : vector<2x32xf32>
    %73 = arith.addf %71, %72 : vector<2x32xf32>
    %74 = math.tanh %73 : vector<2x32xf32>
    %75 = arith.mulf %70, %74 : vector<2x32xf32>
    %76 = arith.truncf %75 : vector<2x32xf32> to vector<2x32xbf16>
    %cst_49 = arith.constant dense<0.000000e+00> : vector<2x128xf32>
    %77 = tpu.matmul %76, %45, %cst_49 {dimension_numbers = #tpu.dot_dimension_numbers<[1], [0], [0], [1], [0, 0, 1, 1], [], []>} : vector<2x32xbf16>, vector<32x128xbf16>, vector<2x128xf32> -> vector<2x128xf32>
    %78 = arith.addf %77, %55 : vector<2x128xf32>
    %79 = arith.addf %78, %49 : vector<2x128xf32>
    %80 = arith.negf %79 : vector<2x128xf32>
    %81 = math.exp %80 : vector<2x128xf32>
    %cst_50 = arith.constant 1.000000e+00 : f32
    %82 = vector.broadcast %cst_50 : f32 to vector<2x128xf32>
    %83 = arith.addf %82, %81 : vector<2x128xf32>
    %84 = arith.divf %82, %83 : vector<2x128xf32>
    %85 = math.tanh %79 : vector<2x128xf32>
    %86 = vector.extract_strided_slice %84 {offsets = [0, 0], sizes = [2, 32], strides = [1, 1]} : vector<2x128xf32> to vector<2x32xf32>
    %87 = vector.extract_strided_slice %84 {offsets = [0, 32], sizes = [2, 32], strides = [1, 1]} : vector<2x128xf32> to vector<2x32xf32>
    %88 = vector.extract_strided_slice %85 {offsets = [0, 64], sizes = [2, 32], strides = [1, 1]} : vector<2x128xf32> to vector<2x32xf32>
    %89 = vector.extract_strided_slice %84 {offsets = [0, 96], sizes = [2, 32], strides = [1, 1]} : vector<2x128xf32> to vector<2x32xf32>
    %90 = arith.mulf %87, %53 : vector<2x32xf32>
    %91 = arith.mulf %86, %88 : vector<2x32xf32>
    %92 = arith.addf %90, %91 : vector<2x32xf32>
    %93 = math.tanh %92 : vector<2x32xf32>
    %94 = arith.mulf %89, %93 : vector<2x32xf32>
    %c0_51 = arith.constant 0 : index
    %c0_52 = arith.constant 0 : index
    %95 = vector.load %arg21[%c0_51, %c0_52] : memref<16x32xf32, #tpu.memory_space<vmem>>, vector<2x32xf32>
    tpu.vector_store %arg21[%c0_51, %c0_52], %94 {strides = array<i32>} : memref<16x32xf32, #tpu.memory_space<vmem>>, vector<2x32xf32>,
    %96 = arith.truncf %94 : vector<2x32xf32> to vector<2x32xbf16>
    %cst_53 = arith.constant dense<0.000000e+00> : vector<2x128xf32>
    %97 = tpu.matmul %96, %46, %cst_53 {dimension_numbers = #tpu.dot_dimension_numbers<[1], [0], [0], [1], [0, 0, 1, 1], [], []>} : vector<2x32xbf16>, vector<32x128xbf16>, vector<2x128xf32> -> vector<2x128xf32>
    %c1_54 = arith.constant 1 : index
    %c0_55 = arith.constant 0 : index
    %c0_56 = arith.constant 0 : index
    %98 = vector.load %arg20[%c1_54, %c0_55, %c0_56] : memref<8x2x128xf32, #tpu.memory_space<vmem>>, vector<1x2x128xf32>
    %99 = vector.shape_cast %98 : vector<1x2x128xf32> to vector<2x128xf32>
    %100 = arith.truncf %75 : vector<2x32xf32> to vector<2x32xbf16>
    %cst_57 = arith.constant dense<0.000000e+00> : vector<2x128xf32>
    %101 = tpu.matmul %100, %44, %cst_57 {dimension_numbers = #tpu.dot_dimension_numbers<[1], [0], [0], [1], [0, 0, 1, 1], [], []>} : vector<2x32xbf16>, vector<32x128xbf16>, vector<2x128xf32> -> vector<2x128xf32>
    %102 = arith.addf %99, %101 : vector<2x128xf32>
    %103 = arith.negf %102 : vector<2x128xf32>
    %104 = math.exp %103 : vector<2x128xf32>
    %cst_58 = arith.constant 1.000000e+00 : f32
    %105 = vector.broadcast %cst_58 : f32 to vector<2x128xf32>
    %106 = arith.addf %105, %104 : vector<2x128xf32>
    %107 = arith.divf %105, %106 : vector<2x128xf32>
    %108 = math.tanh %102 : vector<2x128xf32>
    %109 = vector.extract_strided_slice %107 {offsets = [0, 0], sizes = [2, 32], strides = [1, 1]} : vector<2x128xf32> to vector<2x32xf32>
    %110 = vector.extract_strided_slice %107 {offsets = [0, 32], sizes = [2, 32], strides = [1, 1]} : vector<2x128xf32> to vector<2x32xf32>
    %111 = vector.extract_strided_slice %108 {offsets = [0, 64], sizes = [2, 32], strides = [1, 1]} : vector<2x128xf32> to vector<2x32xf32>
    %112 = vector.extract_strided_slice %107 {offsets = [0, 96], sizes = [2, 32], strides = [1, 1]} : vector<2x128xf32> to vector<2x32xf32>
    %113 = arith.mulf %110, %73 : vector<2x32xf32>
    %114 = arith.mulf %109, %111 : vector<2x32xf32>
    %115 = arith.addf %113, %114 : vector<2x32xf32>
    %116 = math.tanh %115 : vector<2x32xf32>
    %117 = arith.mulf %112, %116 : vector<2x32xf32>
    %118 = arith.truncf %117 : vector<2x32xf32> to vector<2x32xbf16>
    %cst_59 = arith.constant dense<0.000000e+00> : vector<2x128xf32>
    %119 = tpu.matmul %118, %45, %cst_59 {dimension_numbers = #tpu.dot_dimension_numbers<[1], [0], [0], [1], [0, 0, 1, 1], [], []>} : vector<2x32xbf16>, vector<32x128xbf16>, vector<2x128xf32> -> vector<2x128xf32>
    %120 = arith.addf %119, %97 : vector<2x128xf32>
    %121 = arith.addf %120, %49 : vector<2x128xf32>
    %122 = arith.negf %121 : vector<2x128xf32>
    %123 = math.exp %122 : vector<2x128xf32>
    %cst_60 = arith.constant 1.000000e+00 : f32
    %124 = vector.broadcast %cst_60 : f32 to vector<2x128xf32>
    %125 = arith.addf %124, %123 : vector<2x128xf32>
    %126 = arith.divf %124, %125 : vector<2x128xf32>
    %127 = math.tanh %121 : vector<2x128xf32>
    %128 = vector.extract_strided_slice %126 {offsets = [0, 0], sizes = [2, 32], strides = [1, 1]} : vector<2x128xf32> to vector<2x32xf32>
    %129 = vector.extract_strided_slice %126 {offsets = [0, 32], sizes = [2, 32], strides = [1, 1]} : vector<2x128xf32> to vector<2x32xf32>
    %130 = vector.extract_strided_slice %127 {offsets = [0, 64], sizes = [2, 32], strides = [1, 1]} : vector<2x128xf32> to vector<2x32xf32>
    %131 = vector.extract_strided_slice %126 {offsets = [0, 96], sizes = [2, 32], strides = [1, 1]} : vector<2x128xf32> to vector<2x32xf32>
    %132 = arith.mulf %129, %92 : vector<2x32xf32>
    %133 = arith.mulf %128, %130 : vector<2x32xf32>
    %134 = arith.addf %132, %133 : vector<2x32xf32>
    %135 = math.tanh %134 : vector<2x32xf32>
    %136 = arith.mulf %131, %135 : vector<2x32xf32>
    %c2_61 = arith.constant 2 : index
    %c0_62 = arith.constant 0 : index
    %137 = vector.load %arg21[%c2_61, %c0_62] : memref<16x32xf32, #tpu.memory_space<vmem>>, vector<2x32xf32>
    tpu.vector_store %arg21[%c2_61, %c0_62], %136 {strides = array<i32>} : memref<16x32xf32, #tpu.memory_space<vmem>>, vector<2x32xf32>,
    %138 = arith.truncf %136 : vector<2x32xf32> to vector<2x32xbf16>
    %cst_63 = arith.constant dense<0.000000e+00> : vector<2x128xf32>
    %139 = tpu.matmul %138, %46, %cst_63 {dimension_numbers = #tpu.dot_dimension_numbers<[1], [0], [0], [1], [0, 0, 1, 1], [], []>} : vector<2x32xbf16>, vector<32x128xbf16>, vector<2x128xf32> -> vector<2x128xf32>
    %c2_64 = arith.constant 2 : index
    %c0_65 = arith.constant 0 : index
    %c0_66 = arith.constant 0 : index
    %140 = vector.load %arg20[%c2_64, %c0_65, %c0_66] : memref<8x2x128xf32, #tpu.memory_space<vmem>>, vector<1x2x128xf32>
    %141 = vector.shape_cast %140 : vector<1x2x128xf32> to vector<2x128xf32>
    %142 = arith.truncf %117 : vector<2x32xf32> to vector<2x32xbf16>
    %cst_67 = arith.constant dense<0.000000e+00> : vector<2x128xf32>
    %143 = tpu.matmul %142, %44, %cst_67 {dimension_numbers = #tpu.dot_dimension_numbers<[1], [0], [0], [1], [0, 0, 1, 1], [], []>} : vector<2x32xbf16>, vector<32x128xbf16>, vector<2x128xf32> -> vector<2x128xf32>
    %144 = arith.addf %141, %143 : vector<2x128xf32>
    %145 = arith.negf %144 : vector<2x128xf32>
    %146 = math.exp %145 : vector<2x128xf32>
    %cst_68 = arith.constant 1.000000e+00 : f32
    %147 = vector.broadcast %cst_68 : f32 to vector<2x128xf32>
    %148 = arith.addf %147, %146 : vector<2x128xf32>
    %149 = arith.divf %147, %148 : vector<2x128xf32>
    %150 = math.tanh %144 : vector<2x128xf32>
    %151 = vector.extract_strided_slice %149 {offsets = [0, 0], sizes = [2, 32], strides = [1, 1]} : vector<2x128xf32> to vector<2x32xf32>
    %152 = vector.extract_strided_slice %149 {offsets = [0, 32], sizes = [2, 32], strides = [1, 1]} : vector<2x128xf32> to vector<2x32xf32>
    %153 = vector.extract_strided_slice %150 {offsets = [0, 64], sizes = [2, 32], strides = [1, 1]} : vector<2x128xf32> to vector<2x32xf32>
    %154 = vector.extract_strided_slice %149 {offsets = [0, 96], sizes = [2, 32], strides = [1, 1]} : vector<2x128xf32> to vector<2x32xf32>
    %155 = arith.mulf %152, %115 : vector<2x32xf32>
    %156 = arith.mulf %151, %153 : vector<2x32xf32>
    %157 = arith.addf %155, %156 : vector<2x32xf32>
    %158 = math.tanh %157 : vector<2x32xf32>
    %159 = arith.mulf %154, %158 : vector<2x32xf32>
    %160 = arith.truncf %159 : vector<2x32xf32> to vector<2x32xbf16>
    %cst_69 = arith.constant dense<0.000000e+00> : vector<2x128xf32>
    %161 = tpu.matmul %160, %45, %cst_69 {dimension_numbers = #tpu.dot_dimension_numbers<[1], [0], [0], [1], [0, 0, 1, 1], [], []>} : vector<2x32xbf16>, vector<32x128xbf16>, vector<2x128xf32> -> vector<2x128xf32>
    %162 = arith.addf %161, %139 : vector<2x128xf32>
    %163 = arith.addf %162, %49 : vector<2x128xf32>
    %164 = arith.negf %163 : vector<2x128xf32>
    %165 = math.exp %164 : vector<2x128xf32>
    %cst_70 = arith.constant 1.000000e+00 : f32
    %166 = vector.broadcast %cst_70 : f32 to vector<2x128xf32>
    %167 = arith.addf %166, %165 : vector<2x128xf32>
    %168 = arith.divf %166, %167 : vector<2x128xf32>
    %169 = math.tanh %163 : vector<2x128xf32>
    %170 = vector.extract_strided_slice %168 {offsets = [0, 0], sizes = [2, 32], strides = [1, 1]} : vector<2x128xf32> to vector<2x32xf32>
    %171 = vector.extract_strided_slice %168 {offsets = [0, 32], sizes = [2, 32], strides = [1, 1]} : vector<2x128xf32> to vector<2x32xf32>
    %172 = vector.extract_strided_slice %169 {offsets = [0, 64], sizes = [2, 32], strides = [1, 1]} : vector<2x128xf32> to vector<2x32xf32>
    %173 = vector.extract_strided_slice %168 {offsets = [0, 96], sizes = [2, 32], strides = [1, 1]} : vector<2x128xf32> to vector<2x32xf32>
    %174 = arith.mulf %171, %134 : vector<2x32xf32>
    %175 = arith.mulf %170, %172 : vector<2x32xf32>
    %176 = arith.addf %174, %175 : vector<2x32xf32>
    %177 = math.tanh %176 : vector<2x32xf32>
    %178 = arith.mulf %173, %177 : vector<2x32xf32>
    %c4_71 = arith.constant 4 : index
    %c0_72 = arith.constant 0 : index
    %179 = vector.load %arg21[%c4_71, %c0_72] : memref<16x32xf32, #tpu.memory_space<vmem>>, vector<2x32xf32>
    tpu.vector_store %arg21[%c4_71, %c0_72], %178 {strides = array<i32>} : memref<16x32xf32, #tpu.memory_space<vmem>>, vector<2x32xf32>,
    %180 = arith.truncf %178 : vector<2x32xf32> to vector<2x32xbf16>
    %cst_73 = arith.constant dense<0.000000e+00> : vector<2x128xf32>
    %181 = tpu.matmul %180, %46, %cst_73 {dimension_numbers = #tpu.dot_dimension_numbers<[1], [0], [0], [1], [0, 0, 1, 1], [], []>} : vector<2x32xbf16>, vector<32x128xbf16>, vector<2x128xf32> -> vector<2x128xf32>
    %c3_74 = arith.constant 3 : index
    %c0_75 = arith.constant 0 : index
    %c0_76 = arith.constant 0 : index
    %182 = vector.load %arg20[%c3_74, %c0_75, %c0_76] : memref<8x2x128xf32, #tpu.memory_space<vmem>>, vector<1x2x128xf32>
    %183 = vector.shape_cast %182 : vector<1x2x128xf32> to vector<2x128xf32>
    %184 = arith.truncf %159 : vector<2x32xf32> to vector<2x32xbf16>
    %cst_77 = arith.constant dense<0.000000e+00> : vector<2x128xf32>
    %185 = tpu.matmul %184, %44, %cst_77 {dimension_numbers = #tpu.dot_dimension_numbers<[1], [0], [0], [1], [0, 0, 1, 1], [], []>} : vector<2x32xbf16>, vector<32x128xbf16>, vector<2x128xf32> -> vector<2x128xf32>
    %186 = arith.addf %183, %185 : vector<2x128xf32>
    %187 = arith.negf %186 : vector<2x128xf32>
    %188 = math.exp %187 : vector<2x128xf32>
    %cst_78 = arith.constant 1.000000e+00 : f32
    %189 = vector.broadcast %cst_78 : f32 to vector<2x128xf32>
    %190 = arith.addf %189, %188 : vector<2x128xf32>
    %191 = arith.divf %189, %190 : vector<2x128xf32>
    %192 = math.tanh %186 : vector<2x128xf32>
    %193 = vector.extract_strided_slice %191 {offsets = [0, 0], sizes = [2, 32], strides = [1, 1]} : vector<2x128xf32> to vector<2x32xf32>
    %194 = vector.extract_strided_slice %191 {offsets = [0, 32], sizes = [2, 32], strides = [1, 1]} : vector<2x128xf32> to vector<2x32xf32>
    %195 = vector.extract_strided_slice %192 {offsets = [0, 64], sizes = [2, 32], strides = [1, 1]} : vector<2x128xf32> to vector<2x32xf32>
    %196 = vector.extract_strided_slice %191 {offsets = [0, 96], sizes = [2, 32], strides = [1, 1]} : vector<2x128xf32> to vector<2x32xf32>
    %197 = arith.mulf %194, %157 : vector<2x32xf32>
    %198 = arith.mulf %193, %195 : vector<2x32xf32>
    %199 = arith.addf %197, %198 : vector<2x32xf32>
    %200 = math.tanh %199 : vector<2x32xf32>
    %201 = arith.mulf %196, %200 : vector<2x32xf32>
    %202 = arith.truncf %201 : vector<2x32xf32> to vector<2x32xbf16>
    %cst_79 = arith.constant dense<0.000000e+00> : vector<2x128xf32>
    %203 = tpu.matmul %202, %45, %cst_79 {dimension_numbers = #tpu.dot_dimension_numbers<[1], [0], [0], [1], [0, 0, 1, 1], [], []>} : vector<2x32xbf16>, vector<32x128xbf16>, vector<2x128xf32> -> vector<2x128xf32>
    %204 = arith.addf %203, %181 : vector<2x128xf32>
    %205 = arith.addf %204, %49 : vector<2x128xf32>
    %206 = arith.negf %205 : vector<2x128xf32>
    %207 = math.exp %206 : vector<2x128xf32>
    %cst_80 = arith.constant 1.000000e+00 : f32
    %208 = vector.broadcast %cst_80 : f32 to vector<2x128xf32>
    %209 = arith.addf %208, %207 : vector<2x128xf32>
    %210 = arith.divf %208, %209 : vector<2x128xf32>
    %211 = math.tanh %205 : vector<2x128xf32>
    %212 = vector.extract_strided_slice %210 {offsets = [0, 0], sizes = [2, 32], strides = [1, 1]} : vector<2x128xf32> to vector<2x32xf32>
    %213 = vector.extract_strided_slice %210 {offsets = [0, 32], sizes = [2, 32], strides = [1, 1]} : vector<2x128xf32> to vector<2x32xf32>
    %214 = vector.extract_strided_slice %211 {offsets = [0, 64], sizes = [2, 32], strides = [1, 1]} : vector<2x128xf32> to vector<2x32xf32>
    %215 = vector.extract_strided_slice %210 {offsets = [0, 96], sizes = [2, 32], strides = [1, 1]} : vector<2x128xf32> to vector<2x32xf32>
    %216 = arith.mulf %213, %176 : vector<2x32xf32>
    %217 = arith.mulf %212, %214 : vector<2x32xf32>
    %218 = arith.addf %216, %217 : vector<2x32xf32>
    %219 = math.tanh %218 : vector<2x32xf32>
    %220 = arith.mulf %215, %219 : vector<2x32xf32>
    %c6_81 = arith.constant 6 : index
    %c0_82 = arith.constant 0 : index
    %221 = vector.load %arg21[%c6_81, %c0_82] : memref<16x32xf32, #tpu.memory_space<vmem>>, vector<2x32xf32>
    tpu.vector_store %arg21[%c6_81, %c0_82], %220 {strides = array<i32>} : memref<16x32xf32, #tpu.memory_space<vmem>>, vector<2x32xf32>,
    %222 = arith.truncf %220 : vector<2x32xf32> to vector<2x32xbf16>
    %cst_83 = arith.constant dense<0.000000e+00> : vector<2x128xf32>
    %223 = tpu.matmul %222, %46, %cst_83 {dimension_numbers = #tpu.dot_dimension_numbers<[1], [0], [0], [1], [0, 0, 1, 1], [], []>} : vector<2x32xbf16>, vector<32x128xbf16>, vector<2x128xf32> -> vector<2x128xf32>
    %c4_84 = arith.constant 4 : index
    %c0_85 = arith.constant 0 : index
    %c0_86 = arith.constant 0 : index
    %224 = vector.load %arg20[%c4_84, %c0_85, %c0_86] : memref<8x2x128xf32, #tpu.memory_space<vmem>>, vector<1x2x128xf32>
    %225 = vector.shape_cast %224 : vector<1x2x128xf32> to vector<2x128xf32>
    %226 = arith.truncf %201 : vector<2x32xf32> to vector<2x32xbf16>
    %cst_87 = arith.constant dense<0.000000e+00> : vector<2x128xf32>
    %227 = tpu.matmul %226, %44, %cst_87 {dimension_numbers = #tpu.dot_dimension_numbers<[1], [0], [0], [1], [0, 0, 1, 1], [], []>} : vector<2x32xbf16>, vector<32x128xbf16>, vector<2x128xf32> -> vector<2x128xf32>
    %228 = arith.addf %225, %227 : vector<2x128xf32>
    %229 = arith.negf %228 : vector<2x128xf32>
    %230 = math.exp %229 : vector<2x128xf32>
    %cst_88 = arith.constant 1.000000e+00 : f32
    %231 = vector.broadcast %cst_88 : f32 to vector<2x128xf32>
    %232 = arith.addf %231, %230 : vector<2x128xf32>
    %233 = arith.divf %231, %232 : vector<2x128xf32>
    %234 = math.tanh %228 : vector<2x128xf32>
    %235 = vector.extract_strided_slice %233 {offsets = [0, 0], sizes = [2, 32], strides = [1, 1]} : vector<2x128xf32> to vector<2x32xf32>
    %236 = vector.extract_strided_slice %233 {offsets = [0, 32], sizes = [2, 32], strides = [1, 1]} : vector<2x128xf32> to vector<2x32xf32>
    %237 = vector.extract_strided_slice %234 {offsets = [0, 64], sizes = [2, 32], strides = [1, 1]} : vector<2x128xf32> to vector<2x32xf32>
    %238 = vector.extract_strided_slice %233 {offsets = [0, 96], sizes = [2, 32], strides = [1, 1]} : vector<2x128xf32> to vector<2x32xf32>
    %239 = arith.mulf %236, %199 : vector<2x32xf32>
    %240 = arith.mulf %235, %237 : vector<2x32xf32>
    %241 = arith.addf %239, %240 : vector<2x32xf32>
    %242 = math.tanh %241 : vector<2x32xf32>
    %243 = arith.mulf %238, %242 : vector<2x32xf32>
    %244 = arith.truncf %243 : vector<2x32xf32> to vector<2x32xbf16>
    %cst_89 = arith.constant dense<0.000000e+00> : vector<2x128xf32>
    %245 = tpu.matmul %244, %45, %cst_89 {dimension_numbers = #tpu.dot_dimension_numbers<[1], [0], [0], [1], [0, 0, 1, 1], [], []>} : vector<2x32xbf16>, vector<32x128xbf16>, vector<2x128xf32> -> vector<2x128xf32>
    %246 = arith.addf %245, %223 : vector<2x128xf32>
    %247 = arith.addf %246, %49 : vector<2x128xf32>
    %248 = arith.negf %247 : vector<2x128xf32>
    %249 = math.exp %248 : vector<2x128xf32>
    %cst_90 = arith.constant 1.000000e+00 : f32
    %250 = vector.broadcast %cst_90 : f32 to vector<2x128xf32>
    %251 = arith.addf %250, %249 : vector<2x128xf32>
    %252 = arith.divf %250, %251 : vector<2x128xf32>
    %253 = math.tanh %247 : vector<2x128xf32>
    %254 = vector.extract_strided_slice %252 {offsets = [0, 0], sizes = [2, 32], strides = [1, 1]} : vector<2x128xf32> to vector<2x32xf32>
    %255 = vector.extract_strided_slice %252 {offsets = [0, 32], sizes = [2, 32], strides = [1, 1]} : vector<2x128xf32> to vector<2x32xf32>
    %256 = vector.extract_strided_slice %253 {offsets = [0, 64], sizes = [2, 32], strides = [1, 1]} : vector<2x128xf32> to vector<2x32xf32>
    %257 = vector.extract_strided_slice %252 {offsets = [0, 96], sizes = [2, 32], strides = [1, 1]} : vector<2x128xf32> to vector<2x32xf32>
    %258 = arith.mulf %255, %218 : vector<2x32xf32>
    %259 = arith.mulf %254, %256 : vector<2x32xf32>
    %260 = arith.addf %258, %259 : vector<2x32xf32>
    %261 = math.tanh %260 : vector<2x32xf32>
    %262 = arith.mulf %257, %261 : vector<2x32xf32>
    %c8 = arith.constant 8 : index
    %c0_91 = arith.constant 0 : index
    %263 = vector.load %arg21[%c8, %c0_91] : memref<16x32xf32, #tpu.memory_space<vmem>>, vector<2x32xf32>
    tpu.vector_store %arg21[%c8, %c0_91], %262 {strides = array<i32>} : memref<16x32xf32, #tpu.memory_space<vmem>>, vector<2x32xf32>,
    %264 = arith.truncf %262 : vector<2x32xf32> to vector<2x32xbf16>
    %cst_92 = arith.constant dense<0.000000e+00> : vector<2x128xf32>
    %265 = tpu.matmul %264, %46, %cst_92 {dimension_numbers = #tpu.dot_dimension_numbers<[1], [0], [0], [1], [0, 0, 1, 1], [], []>} : vector<2x32xbf16>, vector<32x128xbf16>, vector<2x128xf32> -> vector<2x128xf32>
    %c5_93 = arith.constant 5 : index
    %c0_94 = arith.constant 0 : index
    %c0_95 = arith.constant 0 : index
    %266 = vector.load %arg20[%c5_93, %c0_94, %c0_95] : memref<8x2x128xf32, #tpu.memory_space<vmem>>, vector<1x2x128xf32>
    %267 = vector.shape_cast %266 : vector<1x2x128xf32> to vector<2x128xf32>
    %268 = arith.truncf %243 : vector<2x32xf32> to vector<2x32xbf16>
    %cst_96 = arith.constant dense<0.000000e+00> : vector<2x128xf32>
    %269 = tpu.matmul %268, %44, %cst_96 {dimension_numbers = #tpu.dot_dimension_numbers<[1], [0], [0], [1], [0, 0, 1, 1], [], []>} : vector<2x32xbf16>, vector<32x128xbf16>, vector<2x128xf32> -> vector<2x128xf32>
    %270 = arith.addf %267, %269 : vector<2x128xf32>
    %271 = arith.negf %270 : vector<2x128xf32>
    %272 = math.exp %271 : vector<2x128xf32>
    %cst_97 = arith.constant 1.000000e+00 : f32
    %273 = vector.broadcast %cst_97 : f32 to vector<2x128xf32>
    %274 = arith.addf %273, %272 : vector<2x128xf32>
    %275 = arith.divf %273, %274 : vector<2x128xf32>
    %276 = math.tanh %270 : vector<2x128xf32>
    %277 = vector.extract_strided_slice %275 {offsets = [0, 0], sizes = [2, 32], strides = [1, 1]} : vector<2x128xf32> to vector<2x32xf32>
    %278 = vector.extract_strided_slice %275 {offsets = [0, 32], sizes = [2, 32], strides = [1, 1]} : vector<2x128xf32> to vector<2x32xf32>
    %279 = vector.extract_strided_slice %276 {offsets = [0, 64], sizes = [2, 32], strides = [1, 1]} : vector<2x128xf32> to vector<2x32xf32>
    %280 = vector.extract_strided_slice %275 {offsets = [0, 96], sizes = [2, 32], strides = [1, 1]} : vector<2x128xf32> to vector<2x32xf32>
    %281 = arith.mulf %278, %241 : vector<2x32xf32>
    %282 = arith.mulf %277, %279 : vector<2x32xf32>
    %283 = arith.addf %281, %282 : vector<2x32xf32>
    %284 = math.tanh %283 : vector<2x32xf32>
    %285 = arith.mulf %280, %284 : vector<2x32xf32>
    %286 = arith.truncf %285 : vector<2x32xf32> to vector<2x32xbf16>
    %cst_98 = arith.constant dense<0.000000e+00> : vector<2x128xf32>
    %287 = tpu.matmul %286, %45, %cst_98 {dimension_numbers = #tpu.dot_dimension_numbers<[1], [0], [0], [1], [0, 0, 1, 1], [], []>} : vector<2x32xbf16>, vector<32x128xbf16>, vector<2x128xf32> -> vector<2x128xf32>
    %288 = arith.addf %287, %265 : vector<2x128xf32>
    %289 = arith.addf %288, %49 : vector<2x128xf32>
    %290 = arith.negf %289 : vector<2x128xf32>
    %291 = math.exp %290 : vector<2x128xf32>
    %cst_99 = arith.constant 1.000000e+00 : f32
    %292 = vector.broadcast %cst_99 : f32 to vector<2x128xf32>
    %293 = arith.addf %292, %291 : vector<2x128xf32>
    %294 = arith.divf %292, %293 : vector<2x128xf32>
    %295 = math.tanh %289 : vector<2x128xf32>
    %296 = vector.extract_strided_slice %294 {offsets = [0, 0], sizes = [2, 32], strides = [1, 1]} : vector<2x128xf32> to vector<2x32xf32>
    %297 = vector.extract_strided_slice %294 {offsets = [0, 32], sizes = [2, 32], strides = [1, 1]} : vector<2x128xf32> to vector<2x32xf32>
    %298 = vector.extract_strided_slice %295 {offsets = [0, 64], sizes = [2, 32], strides = [1, 1]} : vector<2x128xf32> to vector<2x32xf32>
    %299 = vector.extract_strided_slice %294 {offsets = [0, 96], sizes = [2, 32], strides = [1, 1]} : vector<2x128xf32> to vector<2x32xf32>
    %300 = arith.mulf %297, %260 : vector<2x32xf32>
    %301 = arith.mulf %296, %298 : vector<2x32xf32>
    %302 = arith.addf %300, %301 : vector<2x32xf32>
    %303 = math.tanh %302 : vector<2x32xf32>
    %304 = arith.mulf %299, %303 : vector<2x32xf32>
    %c10 = arith.constant 10 : index
    %c0_100 = arith.constant 0 : index
    %305 = vector.load %arg21[%c10, %c0_100] : memref<16x32xf32, #tpu.memory_space<vmem>>, vector<2x32xf32>
    tpu.vector_store %arg21[%c10, %c0_100], %304 {strides = array<i32>} : memref<16x32xf32, #tpu.memory_space<vmem>>, vector<2x32xf32>,
    %306 = arith.truncf %304 : vector<2x32xf32> to vector<2x32xbf16>
    %cst_101 = arith.constant dense<0.000000e+00> : vector<2x128xf32>
    %307 = tpu.matmul %306, %46, %cst_101 {dimension_numbers = #tpu.dot_dimension_numbers<[1], [0], [0], [1], [0, 0, 1, 1], [], []>} : vector<2x32xbf16>, vector<32x128xbf16>, vector<2x128xf32> -> vector<2x128xf32>
    %c6_102 = arith.constant 6 : index
    %c0_103 = arith.constant 0 : index
    %c0_104 = arith.constant 0 : index
    %308 = vector.load %arg20[%c6_102, %c0_103, %c0_104] : memref<8x2x128xf32, #tpu.memory_space<vmem>>, vector<1x2x128xf32>
    %309 = vector.shape_cast %308 : vector<1x2x128xf32> to vector<2x128xf32>
    %310 = arith.truncf %285 : vector<2x32xf32> to vector<2x32xbf16>
    %cst_105 = arith.constant dense<0.000000e+00> : vector<2x128xf32>
    %311 = tpu.matmul %310, %44, %cst_105 {dimension_numbers = #tpu.dot_dimension_numbers<[1], [0], [0], [1], [0, 0, 1, 1], [], []>} : vector<2x32xbf16>, vector<32x128xbf16>, vector<2x128xf32> -> vector<2x128xf32>
    %312 = arith.addf %309, %311 : vector<2x128xf32>
    %313 = arith.negf %312 : vector<2x128xf32>
    %314 = math.exp %313 : vector<2x128xf32>
    %cst_106 = arith.constant 1.000000e+00 : f32
    %315 = vector.broadcast %cst_106 : f32 to vector<2x128xf32>
    %316 = arith.addf %315, %314 : vector<2x128xf32>
    %317 = arith.divf %315, %316 : vector<2x128xf32>
    %318 = math.tanh %312 : vector<2x128xf32>
    %319 = vector.extract_strided_slice %317 {offsets = [0, 0], sizes = [2, 32], strides = [1, 1]} : vector<2x128xf32> to vector<2x32xf32>
    %320 = vector.extract_strided_slice %317 {offsets = [0, 32], sizes = [2, 32], strides = [1, 1]} : vector<2x128xf32> to vector<2x32xf32>
    %321 = vector.extract_strided_slice %318 {offsets = [0, 64], sizes = [2, 32], strides = [1, 1]} : vector<2x128xf32> to vector<2x32xf32>
    %322 = vector.extract_strided_slice %317 {offsets = [0, 96], sizes = [2, 32], strides = [1, 1]} : vector<2x128xf32> to vector<2x32xf32>
    %323 = arith.mulf %320, %283 : vector<2x32xf32>
    %324 = arith.mulf %319, %321 : vector<2x32xf32>
    %325 = arith.addf %323, %324 : vector<2x32xf32>
    %326 = math.tanh %325 : vector<2x32xf32>
    %327 = arith.mulf %322, %326 : vector<2x32xf32>
    %328 = arith.truncf %327 : vector<2x32xf32> to vector<2x32xbf16>
    %cst_107 = arith.constant dense<0.000000e+00> : vector<2x128xf32>
    %329 = tpu.matmul %328, %45, %cst_107 {dimension_numbers = #tpu.dot_dimension_numbers<[1], [0], [0], [1], [0, 0, 1, 1], [], []>} : vector<2x32xbf16>, vector<32x128xbf16>, vector<2x128xf32> -> vector<2x128xf32>
    %330 = arith.addf %329, %307 : vector<2x128xf32>
    %331 = arith.addf %330, %49 : vector<2x128xf32>
    %332 = arith.negf %331 : vector<2x128xf32>
    %333 = math.exp %332 : vector<2x128xf32>
    %cst_108 = arith.constant 1.000000e+00 : f32
    %334 = vector.broadcast %cst_108 : f32 to vector<2x128xf32>
    %335 = arith.addf %334, %333 : vector<2x128xf32>
    %336 = arith.divf %334, %335 : vector<2x128xf32>
    %337 = math.tanh %331 : vector<2x128xf32>
    %338 = vector.extract_strided_slice %336 {offsets = [0, 0], sizes = [2, 32], strides = [1, 1]} : vector<2x128xf32> to vector<2x32xf32>
    %339 = vector.extract_strided_slice %336 {offsets = [0, 32], sizes = [2, 32], strides = [1, 1]} : vector<2x128xf32> to vector<2x32xf32>
    %340 = vector.extract_strided_slice %337 {offsets = [0, 64], sizes = [2, 32], strides = [1, 1]} : vector<2x128xf32> to vector<2x32xf32>
    %341 = vector.extract_strided_slice %336 {offsets = [0, 96], sizes = [2, 32], strides = [1, 1]} : vector<2x128xf32> to vector<2x32xf32>
    %342 = arith.mulf %339, %302 : vector<2x32xf32>
    %343 = arith.mulf %338, %340 : vector<2x32xf32>
    %344 = arith.addf %342, %343 : vector<2x32xf32>
    %345 = math.tanh %344 : vector<2x32xf32>
    %346 = arith.mulf %341, %345 : vector<2x32xf32>
    %c12 = arith.constant 12 : index
    %c0_109 = arith.constant 0 : index
    %347 = vector.load %arg21[%c12, %c0_109] : memref<16x32xf32, #tpu.memory_space<vmem>>, vector<2x32xf32>
    tpu.vector_store %arg21[%c12, %c0_109], %346 {strides = array<i32>} : memref<16x32xf32, #tpu.memory_space<vmem>>, vector<2x32xf32>,
    %348 = arith.truncf %346 : vector<2x32xf32> to vector<2x32xbf16>
    %cst_110 = arith.constant dense<0.000000e+00> : vector<2x128xf32>
    %349 = tpu.matmul %348, %46, %cst_110 {dimension_numbers = #tpu.dot_dimension_numbers<[1], [0], [0], [1], [0, 0, 1, 1], [], []>} : vector<2x32xbf16>, vector<32x128xbf16>, vector<2x128xf32> -> vector<2x128xf32>
    %c7_111 = arith.constant 7 : index
    %c0_112 = arith.constant 0 : index
    %c0_113 = arith.constant 0 : index
    %350 = vector.load %arg20[%c7_111, %c0_112, %c0_113] : memref<8x2x128xf32, #tpu.memory_space<vmem>>, vector<1x2x128xf32>
    %351 = vector.shape_cast %350 : vector<1x2x128xf32> to vector<2x128xf32>
    %352 = arith.truncf %327 : vector<2x32xf32> to vector<2x32xbf16>
    %cst_114 = arith.constant dense<0.000000e+00> : vector<2x128xf32>
    %353 = tpu.matmul %352, %44, %cst_114 {dimension_numbers = #tpu.dot_dimension_numbers<[1], [0], [0], [1], [0, 0, 1, 1], [], []>} : vector<2x32xbf16>, vector<32x128xbf16>, vector<2x128xf32> -> vector<2x128xf32>
    %354 = arith.addf %351, %353 : vector<2x128xf32>
    %355 = arith.negf %354 : vector<2x128xf32>
    %356 = math.exp %355 : vector<2x128xf32>
    %cst_115 = arith.constant 1.000000e+00 : f32
    %357 = vector.broadcast %cst_115 : f32 to vector<2x128xf32>
    %358 = arith.addf %357, %356 : vector<2x128xf32>
    %359 = arith.divf %357, %358 : vector<2x128xf32>
    %360 = math.tanh %354 : vector<2x128xf32>
    %361 = vector.extract_strided_slice %359 {offsets = [0, 0], sizes = [2, 32], strides = [1, 1]} : vector<2x128xf32> to vector<2x32xf32>
    %362 = vector.extract_strided_slice %359 {offsets = [0, 32], sizes = [2, 32], strides = [1, 1]} : vector<2x128xf32> to vector<2x32xf32>
    %363 = vector.extract_strided_slice %360 {offsets = [0, 64], sizes = [2, 32], strides = [1, 1]} : vector<2x128xf32> to vector<2x32xf32>
    %364 = vector.extract_strided_slice %359 {offsets = [0, 96], sizes = [2, 32], strides = [1, 1]} : vector<2x128xf32> to vector<2x32xf32>
    %365 = arith.mulf %362, %325 : vector<2x32xf32>
    %366 = arith.mulf %361, %363 : vector<2x32xf32>
    %367 = arith.addf %365, %366 : vector<2x32xf32>
    %368 = math.tanh %367 : vector<2x32xf32>
    %369 = arith.mulf %364, %368 : vector<2x32xf32>
    %370 = arith.truncf %369 : vector<2x32xf32> to vector<2x32xbf16>
    %cst_116 = arith.constant dense<0.000000e+00> : vector<2x128xf32>
    %371 = tpu.matmul %370, %45, %cst_116 {dimension_numbers = #tpu.dot_dimension_numbers<[1], [0], [0], [1], [0, 0, 1, 1], [], []>} : vector<2x32xbf16>, vector<32x128xbf16>, vector<2x128xf32> -> vector<2x128xf32>
    %372 = arith.addf %371, %349 : vector<2x128xf32>
    %373 = arith.addf %372, %49 : vector<2x128xf32>
    %374 = arith.negf %373 : vector<2x128xf32>
    %375 = math.exp %374 : vector<2x128xf32>
    %cst_117 = arith.constant 1.000000e+00 : f32
    %376 = vector.broadcast %cst_117 : f32 to vector<2x128xf32>
    %377 = arith.addf %376, %375 : vector<2x128xf32>
    %378 = arith.divf %376, %377 : vector<2x128xf32>
    %379 = math.tanh %373 : vector<2x128xf32>
    %380 = vector.extract_strided_slice %378 {offsets = [0, 0], sizes = [2, 32], strides = [1, 1]} : vector<2x128xf32> to vector<2x32xf32>
    %381 = vector.extract_strided_slice %378 {offsets = [0, 32], sizes = [2, 32], strides = [1, 1]} : vector<2x128xf32> to vector<2x32xf32>
    %382 = vector.extract_strided_slice %379 {offsets = [0, 64], sizes = [2, 32], strides = [1, 1]} : vector<2x128xf32> to vector<2x32xf32>
    %383 = vector.extract_strided_slice %378 {offsets = [0, 96], sizes = [2, 32], strides = [1, 1]} : vector<2x128xf32> to vector<2x32xf32>
    %384 = arith.mulf %381, %344 : vector<2x32xf32>
    %385 = arith.mulf %380, %382 : vector<2x32xf32>
    %386 = arith.addf %384, %385 : vector<2x32xf32>
    %387 = math.tanh %386 : vector<2x32xf32>
    %388 = arith.mulf %383, %387 : vector<2x32xf32>
    %c14 = arith.constant 14 : index
    %c0_118 = arith.constant 0 : index
    %389 = vector.load %arg21[%c14, %c0_118] : memref<16x32xf32, #tpu.memory_space<vmem>>, vector<2x32xf32>
    tpu.vector_store %arg21[%c14, %c0_118], %388 {strides = array<i32>} : memref<16x32xf32, #tpu.memory_space<vmem>>, vector<2x32xf32>,
    %c0_119 = arith.constant 0 : index
    %c0_120 = arith.constant 0 : index
    %390 = vector.load %arg21[%c0_119, %c0_120] : memref<16x32xf32, #tpu.memory_space<vmem>>, vector<16x32xf32>
    %391 = arith.truncf %390 : vector<16x32xf32> to vector<16x32xbf16>
    %c0_121 = arith.constant 0 : index
    %c0_122 = arith.constant 0 : index
    %392 = vector.load %arg13[%c0_121, %c0_122] : memref<32x128xbf16, #tpu.memory_space<vmem>>, vector<32x128xbf16>
    %cst_123 = arith.constant dense<0.000000e+00> : vector<16x128xf32>
    %393 = tpu.matmul %391, %392, %cst_123 {dimension_numbers = #tpu.dot_dimension_numbers<[1], [0], [0], [1], [0, 0, 1, 1], [], []>} : vector<16x32xbf16>, vector<32x128xbf16>, vector<16x128xf32> -> vector<16x128xf32>
    %c0_124 = arith.constant 0 : index
    %c0_125 = arith.constant 0 : index
    %394 = vector.load %arg14[%c0_124, %c0_125] : memref<1x128xf32, #tpu.memory_space<vmem>>, vector<1x128xf32>
    %395 = vector.broadcast %394 : vector<1x128xf32> to vector<16x128xf32>
    %396 = arith.addf %393, %395 : vector<16x128xf32>
    %c0_126 = arith.constant 0 : index
    %c0_127 = arith.constant 0 : index
    %397 = vector.load %arg15[%c0_126, %c0_127] : memref<16x128xf32, #tpu.memory_space<vmem>>, vector<16x128xf32>
    tpu.vector_store %arg15[%c0_126, %c0_127], %396 {strides = array<i32>} : memref<16x128xf32, #tpu.memory_space<vmem>>, vector<16x128xf32>,
    %c0_128 = arith.constant 0 : index
    %c0_129 = arith.constant 0 : index
    %398 = vector.load %arg16[%c0_128, %c0_129] : memref<2x32xf32, #tpu.memory_space<vmem>>, vector<2x32xf32>
    tpu.vector_store %arg16[%c0_128, %c0_129], %369 {strides = array<i32>} : memref<2x32xf32, #tpu.memory_space<vmem>>, vector<2x32xf32>,
    %c0_130 = arith.constant 0 : index
    %c0_131 = arith.constant 0 : index
    %399 = vector.load %arg17[%c0_130, %c0_131] : memref<2x32xf32, #tpu.memory_space<vmem>>, vector<2x32xf32>
    tpu.vector_store %arg17[%c0_130, %c0_131], %367 {strides = array<i32>} : memref<2x32xf32, #tpu.memory_space<vmem>>, vector<2x32xf32>,
    %c0_132 = arith.constant 0 : index
    %c0_133 = arith.constant 0 : index
    %400 = vector.load %arg18[%c0_132, %c0_133] : memref<2x32xf32, #tpu.memory_space<vmem>>, vector<2x32xf32>
    tpu.vector_store %arg18[%c0_132, %c0_133], %388 {strides = array<i32>} : memref<2x32xf32, #tpu.memory_space<vmem>>, vector<2x32xf32>,
    %c0_134 = arith.constant 0 : index
    %c0_135 = arith.constant 0 : index
    %401 = vector.load %arg19[%c0_134, %c0_135] : memref<2x32xf32, #tpu.memory_space<vmem>>, vector<2x32xf32>
    tpu.vector_store %arg19[%c0_134, %c0_135], %386 {strides = array<i32>} : memref<2x32xf32, #tpu.memory_space<vmem>>, vector<2x32xf32>,
    return
  }
}

</mosaic_0001>

<llo_original>
// kernel: custom_rnn_forward.1
$region0: #{custom_rnn_forward.1}
  #allocation0 [shape = 'u32[]', space=smem, size = 0x4, offset = 0x4, fixed_abs, tag = 'smem constant byte address 0x4 - core index']
  #allocation1 [shape = 'u32[144,128]{1,0:T(1,128)}', space=vmem, size = 0x12000, scoped, tag = 'internal scratch']
  #allocation2 [shape = 'f32[8,2,128]{2,1,0:T(2,128)}', space=vmem, size = 0x2000, scoped, tag = 'scratch operand']
  #allocation3 [shape = 'f32[16,32]{1,0:T(8,128)}', space=vmem, size = 0x2000, scoped, tag = 'scratch operand']
  %s0 = inlined_call_operand.vmem [shape: bf16[16,16], index: 0, kind: input, shape index: {}]
  %s1 = inlined_call_operand.vmem [shape: f32[2,32], index: 1, kind: input, shape index: {}]
  %s2 = inlined_call_operand.vmem [shape: f32[2,32], index: 2, kind: input, shape index: {}]
  %s3 = inlined_call_operand.vmem [shape: f32[2,32], index: 3, kind: input, shape index: {}]
  %s4 = inlined_call_operand.vmem [shape: f32[2,32], index: 4, kind: input, shape index: {}]
  %s5 = inlined_call_operand.vmem [shape: bf16[16,32], index: 5, kind: input, shape index: {}]
  %s6 = inlined_call_operand.vmem [shape: f32[1,32], index: 6, kind: input, shape index: {}]
  %s7 = inlined_call_operand.vmem [shape: bf16[32,128], index: 7, kind: input, shape index: {}]
  %s8 = inlined_call_operand.vmem [shape: bf16[32,128], index: 8, kind: input, shape index: {}]
  %s9 = inlined_call_operand.vmem [shape: f32[1,128], index: 9, kind: input, shape index: {}]
  %s10 = inlined_call_operand.vmem [shape: bf16[32,128], index: 10, kind: input, shape index: {}]
  %s11 = inlined_call_operand.vmem [shape: bf16[32,128], index: 11, kind: input, shape index: {}]
  %s12 = inlined_call_operand.vmem [shape: f32[1,128], index: 12, kind: input, shape index: {}]
  %s13 = inlined_call_operand.vmem [shape: bf16[32,128], index: 13, kind: input, shape index: {}]
  %s14 = inlined_call_operand.vmem [shape: f32[1,128], index: 14, kind: input, shape index: {}]
  %s15 = inlined_call_operand.hbm [shape: f32[16,128], index: 15, kind: output, shape index: {0}]
  %s16 = inlined_call_operand.vmem [shape: f32[2,32], index: 16, kind: output, shape index: {1}]
  %s17 = inlined_call_operand.vmem [shape: f32[2,32], index: 17, kind: output, shape index: {2}]
  %s18 = inlined_call_operand.vmem [shape: f32[2,32], index: 18, kind: output, shape index: {3}]
  %s19 = inlined_call_operand.vmem [shape: f32[2,32], index: 19, kind: output, shape index: {4}]
  %20 = xla_tuple %s15, %s16, %s17, %s18, %s19
  %s21 = sld [smem:[#allocation0]]
  $region102: #{custom_rnn_forward.1} parent=0
    _
  %s23 = ssub.s32 1, %s21
  %s24 = scalar_select 0, %s23, %s21
  $region1: #{custom_rnn_forward.1} parent=0
    #allocation4 [shape = 'u8[8192]{0}', space=vmem, size = 0x2000, scoped, tag = 'output window, operand 0, single buffered']
    #allocation5 [shape = 's32[1]{0}', space=sflag, size = 0x4, scoped, tag = 'scoped memory for custom_rnn_forward.1']
    %25 = vsyncpa [#allocation5], 0
    // Predicated region
    $region2: #{custom_rnn_forward.1} parent=1 // pred_check
      _
    $region3: #{custom_rnn_forward.1} parent=1 // pred_check_branch
      %27 = sbr.rel (0) target = $region5
    $region4: #{custom_rnn_forward.1} parent=1 // pred_region
      _
    $region5: #{custom_rnn_forward.1} parent=1 // pred_fallthru
      _
    // Predicated region
    $region6: #{custom_rnn_forward.1} parent=1 // pred_check
      _
    $region7: #{custom_rnn_forward.1} parent=1 // pred_check_branch
      %29 = sbr.rel (0) target = $region9
    $region8: #{custom_rnn_forward.1} parent=1 // pred_region
      _
    $region9: #{custom_rnn_forward.1} parent=1 // pred_fallthru
      _
    // Predicated region
    $region10: #{custom_rnn_forward.1} parent=1 // pred_check
      _
    $region11: #{custom_rnn_forward.1} parent=1 // pred_check_branch
      %31 = sbr.rel (0) target = $region13
    $region12: #{custom_rnn_forward.1} parent=1 // pred_region
      _
    $region13: #{custom_rnn_forward.1} parent=1 // pred_fallthru
      _
    // Predicated region
    $region14: #{custom_rnn_forward.1} parent=1 // pred_check
      _
    $region15: #{custom_rnn_forward.1} parent=1 // pred_check_branch
      %33 = sbr.rel (0) target = $region17
    $region16: #{custom_rnn_forward.1} parent=1 // pred_region
      _
    $region17: #{custom_rnn_forward.1} parent=1 // pred_fallthru
      _
    // Predicated region
    $region18: #{custom_rnn_forward.1} parent=1 // pred_check
      _
    $region19: #{custom_rnn_forward.1} parent=1 // pred_check_branch
      %35 = sbr.rel (0) target = $region21
    $region20: #{custom_rnn_forward.1} parent=1 // pred_region
      _
    $region21: #{custom_rnn_forward.1} parent=1 // pred_fallthru
      _
    // Predicated region
    $region22: #{custom_rnn_forward.1} parent=1 // pred_check
      _
    $region23: #{custom_rnn_forward.1} parent=1 // pred_check_branch
      %37 = sbr.rel (0) target = $region25
    $region24: #{custom_rnn_forward.1} parent=1 // pred_region
      _
    $region25: #{custom_rnn_forward.1} parent=1 // pred_fallthru
      _
    // Predicated region
    $region26: #{custom_rnn_forward.1} parent=1 // pred_check
      _
    $region27: #{custom_rnn_forward.1} parent=1 // pred_check_branch
      %39 = sbr.rel (0) target = $region29
    $region28: #{custom_rnn_forward.1} parent=1 // pred_region
      _
    $region29: #{custom_rnn_forward.1} parent=1 // pred_fallthru
      _
    // Predicated region
    $region30: #{custom_rnn_forward.1} parent=1 // pred_check
      _
    $region31: #{custom_rnn_forward.1} parent=1 // pred_check_branch
      %41 = sbr.rel (0) target = $region33
    $region32: #{custom_rnn_forward.1} parent=1 // pred_region
      _
    $region33: #{custom_rnn_forward.1} parent=1 // pred_fallthru
      _
    // Predicated region
    $region34: #{custom_rnn_forward.1} parent=1 // pred_check
      _
    $region35: #{custom_rnn_forward.1} parent=1 // pred_check_branch
      %43 = sbr.rel (0) target = $region37
    $region36: #{custom_rnn_forward.1} parent=1 // pred_region
      _
    $region37: #{custom_rnn_forward.1} parent=1 // pred_fallthru
      _
    // Predicated region
    $region38: #{custom_rnn_forward.1} parent=1 // pred_check
      _
    $region39: #{custom_rnn_forward.1} parent=1 // pred_check_branch
      %45 = sbr.rel (0) target = $region41
    $region40: #{custom_rnn_forward.1} parent=1 // pred_region
      _
    $region41: #{custom_rnn_forward.1} parent=1 // pred_fallthru
      _
    // Predicated region
    $region42: #{custom_rnn_forward.1} parent=1 // pred_check
      _
    $region43: #{custom_rnn_forward.1} parent=1 // pred_check_branch
      %47 = sbr.rel (0) target = $region45
    $region44: #{custom_rnn_forward.1} parent=1 // pred_region
      _
    $region45: #{custom_rnn_forward.1} parent=1 // pred_fallthru
      _
    // Predicated region
    $region46: #{custom_rnn_forward.1} parent=1 // pred_check
      _
    $region47: #{custom_rnn_forward.1} parent=1 // pred_check_branch
      %49 = sbr.rel (0) target = $region49
    $region48: #{custom_rnn_forward.1} parent=1 // pred_region
      _
    $region49: #{custom_rnn_forward.1} parent=1 // pred_fallthru
      _
    // Predicated region
    $region50: #{custom_rnn_forward.1} parent=1 // pred_check
      _
    $region51: #{custom_rnn_forward.1} parent=1 // pred_check_branch
      %51 = sbr.rel (0) target = $region53
    $region52: #{custom_rnn_forward.1} parent=1 // pred_region
      _
    $region53: #{custom_rnn_forward.1} parent=1 // pred_fallthru
      _
    // Predicated region
    $region54: #{custom_rnn_forward.1} parent=1 // pred_check
      _
    $region55: #{custom_rnn_forward.1} parent=1 // pred_check_branch
      %53 = sbr.rel (0) target = $region57
    $region56: #{custom_rnn_forward.1} parent=1 // pred_region
      _
    $region57: #{custom_rnn_forward.1} parent=1 // pred_fallthru
      _
    // Predicated region
    $region58: #{custom_rnn_forward.1} parent=1 // pred_check
      _
    $region59: #{custom_rnn_forward.1} parent=1 // pred_check_branch
      %55 = sbr.rel (0) target = $region61
    $region60: #{custom_rnn_forward.1} parent=1 // pred_region
      _
    $region61: #{custom_rnn_forward.1} parent=1 // pred_fallthru
      _
    %v57 = vld [vmem:[%s0] sm:$0xf]
    %v58 = vld [vmem:[%s0 + $0x4] sm:$0xf]
    %v59 = vld [vmem:[%s5] sm:$0xf]
    %v60 = vld [vmem:[%s5 + $0x4] sm:$0xf]
    %v61 = vld [vmem:[%s6] sm:$0x1]
    %v63 = vlaneseq
    %v64 = vshrl.u32 %v63, 7
    %v65 = vsub.s32 0, %v64
    %v66 = vrot.slane %v61, %v65
    %v70 = vunpack.c.l.b16 %v57
    %v71 = vunpack.c.l.b16 %v58
    %v72 = vpack.c.b16 %v71, %v70
    %v75 = vunpack.c.l.b16 %v59
    %v76 = vunpack.c.l.b16 %v60
    %v77 = vpack.c.b16 %v76, %v75
    %vm79 = vcmask 130048
    %v81 = vsel %vm79, %v72, 0
    %83 = vmatprep.subr.bf16.mxu0 0
    %84 = vmatpush1.bf16.msra.mxu0 %v77
    %85 = vmatprep.subr.bf16.mxu0 0
    %86 = vmatpush1.bf16.msra.mxu0 0
    %87 = vmatprep.subr.bf16.mxu0 0
    %88 = vmatpush1.bf16.msra.mxu0 0
    %89 = vmatprep.subr.bf16.mxu0 0
    %90 = vmatpush1.bf16.msra.mxu0 0
    %91 = vmatprep.subr.bf16.mxu0 0
    %92 = vmatpush1.bf16.msra.mxu0 0
    %93 = vmatprep.subr.bf16.mxu0 0
    %94 = vmatpush1.bf16.msra.mxu0 0
    %95 = vmatprep.subr.bf16.mxu0 0
    %96 = vmatpush1.bf16.msra.mxu0 0
    %97 = vmatprep.subr.bf16.mxu0 0
    %98 = vmatpush1.bf16.msra.mxu0 0
    %99 = vmatprep.subr.bf16.mxu0 0
    %100 = vmatpush1.bf16.msra.mxu0 0
    %101 = vmatprep.subr.bf16.mxu0 0
    %102 = vmatpush1.bf16.msra.mxu0 0
    %103 = vmatprep.subr.bf16.mxu0 0
    %104 = vmatpush1.bf16.msra.mxu0 0
    %105 = vmatprep.subr.bf16.mxu0 0
    %106 = vmatpush1.bf16.msra.mxu0 0
    %107 = vmatprep.subr.bf16.mxu0 0
    %108 = vmatpush1.bf16.msra.mxu0 0
    %109 = vmatprep.subr.bf16.mxu0 0
    %110 = vmatpush1.bf16.msra.mxu0 0
    %111 = vmatprep.subr.bf16.mxu0 0
    %112 = vmatpush1.bf16.msra.mxu0 0
    %113 = vmatprep.subr.bf16.mxu0 0
    %114 = vmatpush1.bf16.msra.mxu0 0
    %115 = vmatprep.mubr.bf16.mxu0 0
    %116 = vmatmul.mubr.bf16.gmra.mrb[0].mxu0 %v81
    %v117 = vpop.f32.mrb[0].mxu0
    %v118 = vadd.f32 %v66, %v117
    %v119 = vpop.f32.mrb[0].mxu0
    %v120 = vpop.f32.mrb[0].mxu0
    %v121 = vadd.f32 %v66, %v120
    %v122 = vpop.f32.mrb[0].mxu0
    %123 = vdwg.mxu0
    %v124 = vpack.c.bf16 %v121, %v118
    %v125 = vld [vmem:[%s7] sm:$0xf]
    %v126 = vld [vmem:[%s7 + $0x4] sm:$0xf]
    %v127 = vld [vmem:[%s7 + $0x8] sm:$0xf]
    %v128 = vld [vmem:[%s7 + $0xc] sm:$0xf]
    %v129 = vld [vmem:[%s9] sm:$0x1]
    %v131 = vlaneseq
    %v132 = vshrl.u32 %v131, 7
    %v133 = vsub.s32 0, %v132
    %v134 = vrot.slane %v129, %v133
    %v140 = vunpack.c.l.b16 %v125
    %v141 = vunpack.c.l.b16 %v126
    %v142 = vunpack.c.l.b16 %v127
    %v143 = vunpack.c.l.b16 %v128
    %v144 = vpack.c.b16 %v141, %v140
    %v145 = vpack.c.b16 %v143, %v142
    %vm148 = vcmask 261120
    %v150 = vsel %vm148, %v124, 0
    %152 = vmatprep.subr.bf16.mxu0 0
    %153 = vmatpush1.bf16.msra.mxu0 %v144
    %154 = vmatprep.subr.bf16.mxu0 0
    %155 = vmatpush1.bf16.msra.mxu0 %v145
    %156 = vmatprep.subr.bf16.mxu0 0
    %157 = vmatpush1.bf16.msra.mxu0 0
    %158 = vmatprep.subr.bf16.mxu0 0
    %159 = vmatpush1.bf16.msra.mxu0 0
    %160 = vmatprep.subr.bf16.mxu0 0
    %161 = vmatpush1.bf16.msra.mxu0 0
    %162 = vmatprep.subr.bf16.mxu0 0
    %163 = vmatpush1.bf16.msra.mxu0 0
    %164 = vmatprep.subr.bf16.mxu0 0
    %165 = vmatpush1.bf16.msra.mxu0 0
    %166 = vmatprep.subr.bf16.mxu0 0
    %167 = vmatpush1.bf16.msra.mxu0 0
    %168 = vmatprep.subr.bf16.mxu0 0
    %169 = vmatpush1.bf16.msra.mxu0 0
    %170 = vmatprep.subr.bf16.mxu0 0
    %171 = vmatpush1.bf16.msra.mxu0 0
    %172 = vmatprep.subr.bf16.mxu0 0
    %173 = vmatpush1.bf16.msra.mxu0 0
    %174 = vmatprep.subr.bf16.mxu0 0
    %175 = vmatpush1.bf16.msra.mxu0 0
    %176 = vmatprep.subr.bf16.mxu0 0
    %177 = vmatpush1.bf16.msra.mxu0 0
    %178 = vmatprep.subr.bf16.mxu0 0
    %179 = vmatpush1.bf16.msra.mxu0 0
    %180 = vmatprep.subr.bf16.mxu0 0
    %181 = vmatpush1.bf16.msra.mxu0 0
    %182 = vmatprep.subr.bf16.mxu0 0
    %183 = vmatpush1.bf16.msra.mxu0 0
    %184 = vmatprep.mubr.bf16.mxu0 0
    %185 = vmatmul.mubr.bf16.gmra.mrb[0].mxu0 %v150
    %v186 = vpop.f32.mrb[0].mxu0
    %v187 = vadd.f32 %v134, %v186
    %v188 = vpop.f32.mrb[0].mxu0
    %v189 = vpop.f32.mrb[0].mxu0
    %v190 = vadd.f32 %v134, %v189
    %v191 = vpop.f32.mrb[0].mxu0
    %192 = vdwg.mxu0
    %193 = vst [vmem:[#allocation2] sm:$0x3] %v187
    %s194 = scalar_lea.vmem [#allocation2], 2
    %195 = vst [vmem:[%s194 - $0x2] sm:$0xc] %v187
    %s196 = scalar_lea.vmem [#allocation2], 4
    %197 = vst [vmem:[%s196 - $0x4] sm:$0x30] %v187
    %s198 = scalar_lea.vmem [#allocation2], 6
    %199 = vst [vmem:[%s198 - $0x6] sm:$0xc0] %v187
    %s200 = scalar_lea.vmem [#allocation2], 8
    %201 = vst [vmem:[%s200] sm:$0x3] %v190
    %s202 = scalar_lea.vmem [#allocation2], 10
    %203 = vst [vmem:[%s202 - $0x2] sm:$0xc] %v190
    %s204 = scalar_lea.vmem [#allocation2], 12
    %205 = vst [vmem:[%s204 - $0x4] sm:$0x30] %v190
    %s206 = scalar_lea.vmem [#allocation2], 14
    %207 = vst [vmem:[%s206 - $0x6] sm:$0xc0] %v190
    %v208 = vld [vmem:[%s8] sm:$0xf]
    %v209 = vld [vmem:[%s8 + $0x4] sm:$0xf]
    %v210 = vld [vmem:[%s8 + $0x8] sm:$0xf]
    %v211 = vld [vmem:[%s8 + $0xc] sm:$0xf]
    %v212 = vld [vmem:[%s10] sm:$0xf]
    %v213 = vld [vmem:[%s10 + $0x4] sm:$0xf]
    %v214 = vld [vmem:[%s10 + $0x8] sm:$0xf]
    %v215 = vld [vmem:[%s10 + $0xc] sm:$0xf]
    %v216 = vld [vmem:[%s11] sm:$0xf]
    %v217 = vld [vmem:[%s11 + $0x4] sm:$0xf]
    %v218 = vld [vmem:[%s11 + $0x8] sm:$0xf]
    %v219 = vld [vmem:[%s11 + $0xc] sm:$0xf]
    %v220 = vld [vmem:[%s12] sm:$0x1]
    %v222 = vlaneseq
    %v223 = vshrl.u32 %v222, 7
    %v224 = vsub.s32 0, %v223
    %v225 = vrot.slane %v220, %v224
    %v227 = vld [vmem:[%s1] sm:$0x3]
    %v228 = vld [vmem:[%s2] sm:$0x3]
    %v229 = vld [vmem:[%s3] sm:$0x3]
    %v230 = vld [vmem:[%s4] sm:$0x3]
    %v231 = vpack.c.bf16 %v229, %v229
    %v236 = vunpack.c.l.b16 %v216
    %v237 = vunpack.c.l.b16 %v217
    %v238 = vunpack.c.l.b16 %v218
    %v239 = vunpack.c.l.b16 %v219
    %v240 = vpack.c.b16 %v237, %v236
    %v241 = vpack.c.b16 %v239, %v238
    %v245 = vsel %vm148, %v231, 0
    %247 = vmatprep.subr.bf16.mxu0 0
    %248 = vmatpush1.bf16.msra.mxu0 %v240
    %249 = vmatprep.subr.bf16.mxu0 0
    %250 = vmatpush1.bf16.msra.mxu0 %v241
    %251 = vmatprep.subr.bf16.mxu0 0
    %252 = vmatpush1.bf16.msra.mxu0 0
    %253 = vmatprep.subr.bf16.mxu0 0
    %254 = vmatpush1.bf16.msra.mxu0 0
    %255 = vmatprep.subr.bf16.mxu0 0
    %256 = vmatpush1.bf16.msra.mxu0 0
    %257 = vmatprep.subr.bf16.mxu0 0
    %258 = vmatpush1.bf16.msra.mxu0 0
    %259 = vmatprep.subr.bf16.mxu0 0
    %260 = vmatpush1.bf16.msra.mxu0 0
    %261 = vmatprep.subr.bf16.mxu0 0
    %262 = vmatpush1.bf16.msra.mxu0 0
    %263 = vmatprep.subr.bf16.mxu0 0
    %264 = vmatpush1.bf16.msra.mxu0 0
    %265 = vmatprep.subr.bf16.mxu0 0
    %266 = vmatpush1.bf16.msra.mxu0 0
    %267 = vmatprep.subr.bf16.mxu0 0
    %268 = vmatpush1.bf16.msra.mxu0 0
    %269 = vmatprep.subr.bf16.mxu0 0
    %270 = vmatpush1.bf16.msra.mxu0 0
    %271 = vmatprep.subr.bf16.mxu0 0
    %272 = vmatpush1.bf16.msra.mxu0 0
    %273 = vmatprep.subr.bf16.mxu0 0
    %274 = vmatpush1.bf16.msra.mxu0 0
    %275 = vmatprep.subr.bf16.mxu0 0
    %276 = vmatpush1.bf16.msra.mxu0 0
    %277 = vmatprep.subr.bf16.mxu0 0
    %278 = vmatpush1.bf16.msra.mxu0 0
    %279 = vmatprep.mubr.bf16.mxu0 0
    %280 = vmatmul.mubr.bf16.gmra.mrb[0].mxu0 %v245
    %v281 = vpop.f32.mrb[0].mxu0
    %v282 = vadd.f32 0.0, %v281
    %v283 = vpop.f32.mrb[0].mxu0
    %v284 = vpop.f32.mrb[0].mxu0
    %v285 = vpop.f32.mrb[0].mxu0
    %286 = vdwg.mxu0
    %v287 = vld [vmem:[#allocation2] sm:$0x3]
    %v288 = vpack.c.bf16 %v227, %v227
    %v293 = vunpack.c.l.b16 %v208
    %v294 = vunpack.c.l.b16 %v209
    %v295 = vunpack.c.l.b16 %v210
    %v296 = vunpack.c.l.b16 %v211
    %v297 = vpack.c.b16 %v294, %v293
    %v298 = vpack.c.b16 %v296, %v295
    %v302 = vsel %vm148, %v288, 0
    %304 = vmatprep.subr.bf16.mxu0 0
    %305 = vmatpush1.bf16.msra.mxu0 %v297
    %306 = vmatprep.subr.bf16.mxu0 0
    %307 = vmatpush1.bf16.msra.mxu0 %v298
    %308 = vmatprep.subr.bf16.mxu0 0
    %309 = vmatpush1.bf16.msra.mxu0 0
    %310 = vmatprep.subr.bf16.mxu0 0
    %311 = vmatpush1.bf16.msra.mxu0 0
    %312 = vmatprep.subr.bf16.mxu0 0
    %313 = vmatpush1.bf16.msra.mxu0 0
    %314 = vmatprep.subr.bf16.mxu0 0
    %315 = vmatpush1.bf16.msra.mxu0 0
    %316 = vmatprep.subr.bf16.mxu0 0
    %317 = vmatpush1.bf16.msra.mxu0 0
    %318 = vmatprep.subr.bf16.mxu0 0
    %319 = vmatpush1.bf16.msra.mxu0 0
    %320 = vmatprep.subr.bf16.mxu0 0
    %321 = vmatpush1.bf16.msra.mxu0 0
    %322 = vmatprep.subr.bf16.mxu0 0
    %323 = vmatpush1.bf16.msra.mxu0 0
    %324 = vmatprep.subr.bf16.mxu0 0
    %325 = vmatpush1.bf16.msra.mxu0 0
    %326 = vmatprep.subr.bf16.mxu0 0
    %327 = vmatpush1.bf16.msra.mxu0 0
    %328 = vmatprep.subr.bf16.mxu0 0
    %329 = vmatpush1.bf16.msra.mxu0 0
    %330 = vmatprep.subr.bf16.mxu0 0
    %331 = vmatpush1.bf16.msra.mxu0 0
    %332 = vmatprep.subr.bf16.mxu0 0
    %333 = vmatpush1.bf16.msra.mxu0 0
    %334 = vmatprep.subr.bf16.mxu0 0
    %335 = vmatpush1.bf16.msra.mxu0 0
    %336 = vmatprep.mubr.bf16.mxu0 0
    %337 = vmatmul.mubr.bf16.gmra.mrb[0].mxu0 %v302
    %v338 = vpop.f32.mrb[0].mxu0
    %v339 = vadd.f32 0.0, %v338
    %v340 = vpop.f32.mrb[0].mxu0
    %v341 = vpop.f32.mrb[0].mxu0
    %v342 = vpop.f32.mrb[0].mxu0
    %343 = vdwg.mxu0
    %v344 = vadd.f32 %v287, %v339
    %v345 = vxor.u32 %v344, 2147483648
    %v346 = vmul.f32 %v345, 1.442695
    %v347 = vpow.pop %v346
    %v348 = vadd.f32 %v347, 1.0
    %v349 = vrcp.pop %v348
    %v350 = vmul.f32 1.0, %v349
    %v351 = vtanh.pop %v344
    %353 = vrot.lane.b32.xlu0 %v228, 32
    %v354 = vpop.permute.xlu0 %353
    %v356 = vmul.f32 %v350, %v354
    %358 = vrot.lane.b32.xlu0 %v351, 64
    %v359 = vpop.permute.xlu0 %358
    %v361 = vmul.f32 %v350, %v359
    %363 = vrot.lane.b32.xlu0 %v361, 32
    %v364 = vpop.permute.xlu0 %363
    %v366 = vadd.f32 %v356, %v364
    %v367 = vtanh.pop %v366
    %369 = vrot.lane.b32.xlu0 %v367, 64
    %v370 = vpop.permute.xlu0 %369
    %v372 = vmul.f32 %v350, %v370
    %v373 = vpack.c.bf16 %v372, %v372
    %375 = vrot.lane.b32.xlu0 %v373, 32
    %v376 = vpop.permute.xlu0 %375
    %v381 = vunpack.c.l.b16 %v212
    %v382 = vunpack.c.l.b16 %v213
    %v383 = vunpack.c.l.b16 %v214
    %v384 = vunpack.c.l.b16 %v215
    %v385 = vpack.c.b16 %v382, %v381
    %v386 = vpack.c.b16 %v384, %v383
    %v390 = vsel %vm148, %v376, 0
    %392 = vmatprep.subr.bf16.mxu0 0
    %393 = vmatpush1.bf16.msra.mxu0 %v385
    %394 = vmatprep.subr.bf16.mxu0 0
    %395 = vmatpush1.bf16.msra.mxu0 %v386
    %396 = vmatprep.subr.bf16.mxu0 0
    %397 = vmatpush1.bf16.msra.mxu0 0
    %398 = vmatprep.subr.bf16.mxu0 0
    %399 = vmatpush1.bf16.msra.mxu0 0
    %400 = vmatprep.subr.bf16.mxu0 0
    %401 = vmatpush1.bf16.msra.mxu0 0
    %402 = vmatprep.subr.bf16.mxu0 0
    %403 = vmatpush1.bf16.msra.mxu0 0
    %404 = vmatprep.subr.bf16.mxu0 0
    %405 = vmatpush1.bf16.msra.mxu0 0
    %406 = vmatprep.subr.bf16.mxu0 0
    %407 = vmatpush1.bf16.msra.mxu0 0
    %408 = vmatprep.subr.bf16.mxu0 0
    %409 = vmatpush1.bf16.msra.mxu0 0
    %410 = vmatprep.subr.bf16.mxu0 0
    %411 = vmatpush1.bf16.msra.mxu0 0
    %412 = vmatprep.subr.bf16.mxu0 0
    %413 = vmatpush1.bf16.msra.mxu0 0
    %414 = vmatprep.subr.bf16.mxu0 0
    %415 = vmatpush1.bf16.msra.mxu0 0
    %416 = vmatprep.subr.bf16.mxu0 0
    %417 = vmatpush1.bf16.msra.mxu0 0
    %418 = vmatprep.subr.bf16.mxu0 0
    %419 = vmatpush1.bf16.msra.mxu0 0
    %420 = vmatprep.subr.bf16.mxu0 0
    %421 = vmatpush1.bf16.msra.mxu0 0
    %422 = vmatprep.subr.bf16.mxu0 0
    %423 = vmatpush1.bf16.msra.mxu0 0
    %424 = vmatprep.mubr.bf16.mxu0 0
    %425 = vmatmul.mubr.bf16.gmra.mrb[0].mxu0 %v390
    %v426 = vpop.f32.mrb[0].mxu0
    %v427 = vadd.f32 %v282, %v426
    %v428 = vpop.f32.mrb[0].mxu0
    %v429 = vpop.f32.mrb[0].mxu0
    %v430 = vpop.f32.mrb[0].mxu0
    %431 = vdwg.mxu0
    %v432 = vadd.f32 %v427, %v225
    %v433 = vxor.u32 %v432, 2147483648
    %v434 = vmul.f32 %v433, 1.442695
    %v435 = vpow.pop %v434
    %v436 = vadd.f32 %v435, 1.0
    %v437 = vrcp.pop %v436
    %v438 = vmul.f32 1.0, %v437
    %v439 = vtanh.pop %v432
    %441 = vrot.lane.b32.xlu0 %v230, 32
    %v442 = vpop.permute.xlu0 %441
    %v444 = vmul.f32 %v438, %v442
    %446 = vrot.lane.b32.xlu0 %v439, 64
    %v447 = vpop.permute.xlu0 %446
    %v449 = vmul.f32 %v438, %v447
    %451 = vrot.lane.b32.xlu0 %v449, 32
    %v452 = vpop.permute.xlu0 %451
    %v454 = vadd.f32 %v444, %v452
    %v455 = vtanh.pop %v454
    %457 = vrot.lane.b32.xlu0 %v455, 64
    %v458 = vpop.permute.xlu0 %457
    %v460 = vmul.f32 %v438, %v458
    %462 = vrot.lane.b32.xlu0 %v460, 32
    %v463 = vpop.permute.xlu0 %462
    %vm465 = vcmask 254976
    %466 = vst.msk [vmem:[#allocation3] sm:$0x3] %vm465, %v463
    %v467 = vpack.c.bf16 %v460, %v460
    %469 = vrot.lane.b32.xlu0 %v467, 32
    %v470 = vpop.permute.xlu0 %469
    %v472 = vsel %vm148, %v470, 0
    %474 = vmatprep.subr.bf16.mxu0 0
    %475 = vmatpush1.bf16.msra.mxu0 %v240
    %476 = vmatprep.subr.bf16.mxu0 0
    %477 = vmatpush1.bf16.msra.mxu0 %v241
    %478 = vmatprep.subr.bf16.mxu0 0
    %479 = vmatpush1.bf16.msra.mxu0 0
    %480 = vmatprep.subr.bf16.mxu0 0
    %481 = vmatpush1.bf16.msra.mxu0 0
    %482 = vmatprep.subr.bf16.mxu0 0
    %483 = vmatpush1.bf16.msra.mxu0 0
    %484 = vmatprep.subr.bf16.mxu0 0
    %485 = vmatpush1.bf16.msra.mxu0 0
    %486 = vmatprep.subr.bf16.mxu0 0
    %487 = vmatpush1.bf16.msra.mxu0 0
    %488 = vmatprep.subr.bf16.mxu0 0
    %489 = vmatpush1.bf16.msra.mxu0 0
    %490 = vmatprep.subr.bf16.mxu0 0
    %491 = vmatpush1.bf16.msra.mxu0 0
    %492 = vmatprep.subr.bf16.mxu0 0
    %493 = vmatpush1.bf16.msra.mxu0 0
    %494 = vmatprep.subr.bf16.mxu0 0
    %495 = vmatpush1.bf16.msra.mxu0 0
    %496 = vmatprep.subr.bf16.mxu0 0
    %497 = vmatpush1.bf16.msra.mxu0 0
    %498 = vmatprep.subr.bf16.mxu0 0
    %499 = vmatpush1.bf16.msra.mxu0 0
    %500 = vmatprep.subr.bf16.mxu0 0
    %501 = vmatpush1.bf16.msra.mxu0 0
    %502 = vmatprep.subr.bf16.mxu0 0
    %503 = vmatpush1.bf16.msra.mxu0 0
    %504 = vmatprep.subr.bf16.mxu0 0
    %505 = vmatpush1.bf16.msra.mxu0 0
    %506 = vmatprep.mubr.bf16.mxu0 0
    %507 = vmatmul.mubr.bf16.gmra.mrb[0].mxu0 %v472
    %v508 = vpop.f32.mrb[0].mxu0
    %v509 = vadd.f32 0.0, %v508
    %v510 = vpop.f32.mrb[0].mxu0
    %v511 = vpop.f32.mrb[0].mxu0
    %v512 = vpop.f32.mrb[0].mxu0
    %513 = vdwg.mxu0
    %v514 = vld [vmem:[%s194] sm:$0x3]
    %515 = vmatprep.subr.bf16.mxu0 0
    %516 = vmatpush1.bf16.msra.mxu0 %v297
    %517 = vmatprep.subr.bf16.mxu0 0
    %518 = vmatpush1.bf16.msra.mxu0 %v298
    %519 = vmatprep.subr.bf16.mxu0 0
    %520 = vmatpush1.bf16.msra.mxu0 0
    %521 = vmatprep.subr.bf16.mxu0 0
    %522 = vmatpush1.bf16.msra.mxu0 0
    %523 = vmatprep.subr.bf16.mxu0 0
    %524 = vmatpush1.bf16.msra.mxu0 0
    %525 = vmatprep.subr.bf16.mxu0 0
    %526 = vmatpush1.bf16.msra.mxu0 0
    %527 = vmatprep.subr.bf16.mxu0 0
    %528 = vmatpush1.bf16.msra.mxu0 0
    %529 = vmatprep.subr.bf16.mxu0 0
    %530 = vmatpush1.bf16.msra.mxu0 0
    %531 = vmatprep.subr.bf16.mxu0 0
    %532 = vmatpush1.bf16.msra.mxu0 0
    %533 = vmatprep.subr.bf16.mxu0 0
    %534 = vmatpush1.bf16.msra.mxu0 0
    %535 = vmatprep.subr.bf16.mxu0 0
    %536 = vmatpush1.bf16.msra.mxu0 0
    %537 = vmatprep.subr.bf16.mxu0 0
    %538 = vmatpush1.bf16.msra.mxu0 0
    %539 = vmatprep.subr.bf16.mxu0 0
    %540 = vmatpush1.bf16.msra.mxu0 0
    %541 = vmatprep.subr.bf16.mxu0 0
    %542 = vmatpush1.bf16.msra.mxu0 0
    %543 = vmatprep.subr.bf16.mxu0 0
    %544 = vmatpush1.bf16.msra.mxu0 0
    %545 = vmatprep.subr.bf16.mxu0 0
    %546 = vmatpush1.bf16.msra.mxu0 0
    %547 = vmatprep.mubr.bf16.mxu0 0
    %548 = vmatmul.mubr.bf16.gmra.mrb[0].mxu0 %v390
    %v549 = vpop.f32.mrb[0].mxu0
    %v550 = vadd.f32 0.0, %v549
    %v551 = vpop.f32.mrb[0].mxu0
    %v552 = vpop.f32.mrb[0].mxu0
    %v553 = vpop.f32.mrb[0].mxu0
    %554 = vdwg.mxu0
    %v555 = vadd.f32 %v514, %v550
    %v556 = vxor.u32 %v555, 2147483648
    %v557 = vmul.f32 %v556, 1.442695
    %v558 = vpow.pop %v557
    %v559 = vadd.f32 %v558, 1.0
    %v560 = vrcp.pop %v559
    %v561 = vmul.f32 1.0, %v560
    %v562 = vtanh.pop %v555
    %v563 = vmul.f32 %v561, %v366
    %565 = vrot.lane.b32.xlu0 %v562, 64
    %v566 = vpop.permute.xlu0 %565
    %v568 = vmul.f32 %v561, %v566
    %570 = vrot.lane.b32.xlu0 %v568, 32
    %v571 = vpop.permute.xlu0 %570
    %v573 = vadd.f32 %v563, %v571
    %v574 = vtanh.pop %v573
    %576 = vrot.lane.b32.xlu0 %v574, 64
    %v577 = vpop.permute.xlu0 %576
    %v579 = vmul.f32 %v561, %v577
    %v580 = vpack.c.bf16 %v579, %v579
    %582 = vrot.lane.b32.xlu0 %v580, 32
    %v583 = vpop.permute.xlu0 %582
    %v585 = vsel %vm148, %v583, 0
    %587 = vmatprep.subr.bf16.mxu0 0
    %588 = vmatpush1.bf16.msra.mxu0 %v385
    %589 = vmatprep.subr.bf16.mxu0 0
    %590 = vmatpush1.bf16.msra.mxu0 %v386
    %591 = vmatprep.subr.bf16.mxu0 0
    %592 = vmatpush1.bf16.msra.mxu0 0
    %593 = vmatprep.subr.bf16.mxu0 0
    %594 = vmatpush1.bf16.msra.mxu0 0
    %595 = vmatprep.subr.bf16.mxu0 0
    %596 = vmatpush1.bf16.msra.mxu0 0
    %597 = vmatprep.subr.bf16.mxu0 0
    %598 = vmatpush1.bf16.msra.mxu0 0
    %599 = vmatprep.subr.bf16.mxu0 0
    %600 = vmatpush1.bf16.msra.mxu0 0
    %601 = vmatprep.subr.bf16.mxu0 0
    %602 = vmatpush1.bf16.msra.mxu0 0
    %603 = vmatprep.subr.bf16.mxu0 0
    %604 = vmatpush1.bf16.msra.mxu0 0
    %605 = vmatprep.subr.bf16.mxu0 0
    %606 = vmatpush1.bf16.msra.mxu0 0
    %607 = vmatprep.subr.bf16.mxu0 0
    %608 = vmatpush1.bf16.msra.mxu0 0
    %609 = vmatprep.subr.bf16.mxu0 0
    %610 = vmatpush1.bf16.msra.mxu0 0
    %611 = vmatprep.subr.bf16.mxu0 0
    %612 = vmatpush1.bf16.msra.mxu0 0
    %613 = vmatprep.subr.bf16.mxu0 0
    %614 = vmatpush1.bf16.msra.mxu0 0
    %615 = vmatprep.subr.bf16.mxu0 0
    %616 = vmatpush1.bf16.msra.mxu0 0
    %617 = vmatprep.subr.bf16.mxu0 0
    %618 = vmatpush1.bf16.msra.mxu0 0
    %619 = vmatprep.mubr.bf16.mxu0 0
    %620 = vmatmul.mubr.bf16.gmra.mrb[0].mxu0 %v585
    %v621 = vpop.f32.mrb[0].mxu0
    %v622 = vadd.f32 %v509, %v621
    %v623 = vpop.f32.mrb[0].mxu0
    %v624 = vpop.f32.mrb[0].mxu0
    %v625 = vpop.f32.mrb[0].mxu0
    %626 = vdwg.mxu0
    %v627 = vadd.f32 %v622, %v225
    %v628 = vxor.u32 %v627, 2147483648
    %v629 = vmul.f32 %v628, 1.442695
    %v630 = vpow.pop %v629
    %v631 = vadd.f32 %v630, 1.0
    %v632 = vrcp.pop %v631
    %v633 = vmul.f32 1.0, %v632
    %v634 = vtanh.pop %v627
    %v635 = vmul.f32 %v633, %v454
    %637 = vrot.lane.b32.xlu0 %v634, 64
    %v638 = vpop.permute.xlu0 %637
    %v640 = vmul.f32 %v633, %v638
    %642 = vrot.lane.b32.xlu0 %v640, 32
    %v643 = vpop.permute.xlu0 %642
    %v645 = vadd.f32 %v635, %v643
    %v646 = vtanh.pop %v645
    %648 = vrot.lane.b32.xlu0 %v646, 64
    %v649 = vpop.permute.xlu0 %648
    %v651 = vmul.f32 %v633, %v649
    %653 = vrot.lane.b32.xlu0 %v651, 32
    %v654 = vpop.permute.xlu0 %653
    %656 = vst.msk [vmem:[#allocation3 + $0x2] sm:$0x3] %vm465, %v654
    %v657 = vpack.c.bf16 %v651, %v651
    %659 = vrot.lane.b32.xlu0 %v657, 32
    %v660 = vpop.permute.xlu0 %659
    %v662 = vsel %vm148, %v660, 0
    %664 = vmatprep.subr.bf16.mxu0 0
    %665 = vmatpush1.bf16.msra.mxu0 %v240
    %666 = vmatprep.subr.bf16.mxu0 0
    %667 = vmatpush1.bf16.msra.mxu0 %v241
    %668 = vmatprep.subr.bf16.mxu0 0
    %669 = vmatpush1.bf16.msra.mxu0 0
    %670 = vmatprep.subr.bf16.mxu0 0
    %671 = vmatpush1.bf16.msra.mxu0 0
    %672 = vmatprep.subr.bf16.mxu0 0
    %673 = vmatpush1.bf16.msra.mxu0 0
    %674 = vmatprep.subr.bf16.mxu0 0
    %675 = vmatpush1.bf16.msra.mxu0 0
    %676 = vmatprep.subr.bf16.mxu0 0
    %677 = vmatpush1.bf16.msra.mxu0 0
    %678 = vmatprep.subr.bf16.mxu0 0
    %679 = vmatpush1.bf16.msra.mxu0 0
    %680 = vmatprep.subr.bf16.mxu0 0
    %681 = vmatpush1.bf16.msra.mxu0 0
    %682 = vmatprep.subr.bf16.mxu0 0
    %683 = vmatpush1.bf16.msra.mxu0 0
    %684 = vmatprep.subr.bf16.mxu0 0
    %685 = vmatpush1.bf16.msra.mxu0 0
    %686 = vmatprep.subr.bf16.mxu0 0
    %687 = vmatpush1.bf16.msra.mxu0 0
    %688 = vmatprep.subr.bf16.mxu0 0
    %689 = vmatpush1.bf16.msra.mxu0 0
    %690 = vmatprep.subr.bf16.mxu0 0
    %691 = vmatpush1.bf16.msra.mxu0 0
    %692 = vmatprep.subr.bf16.mxu0 0
    %693 = vmatpush1.bf16.msra.mxu0 0
    %694 = vmatprep.subr.bf16.mxu0 0
    %695 = vmatpush1.bf16.msra.mxu0 0
    %696 = vmatprep.mubr.bf16.mxu0 0
    %697 = vmatmul.mubr.bf16.gmra.mrb[0].mxu0 %v662
    %v698 = vpop.f32.mrb[0].mxu0
    %v699 = vadd.f32 0.0, %v698
    %v700 = vpop.f32.mrb[0].mxu0
    %v701 = vpop.f32.mrb[0].mxu0
    %v702 = vpop.f32.mrb[0].mxu0
    %703 = vdwg.mxu0
    %v704 = vld [vmem:[%s196] sm:$0x3]
    %705 = vmatprep.subr.bf16.mxu0 0
    %706 = vmatpush1.bf16.msra.mxu0 %v297
    %707 = vmatprep.subr.bf16.mxu0 0
    %708 = vmatpush1.bf16.msra.mxu0 %v298
    %709 = vmatprep.subr.bf16.mxu0 0
    %710 = vmatpush1.bf16.msra.mxu0 0
    %711 = vmatprep.subr.bf16.mxu0 0
    %712 = vmatpush1.bf16.msra.mxu0 0
    %713 = vmatprep.subr.bf16.mxu0 0
    %714 = vmatpush1.bf16.msra.mxu0 0
    %715 = vmatprep.subr.bf16.mxu0 0
    %716 = vmatpush1.bf16.msra.mxu0 0
    %717 = vmatprep.subr.bf16.mxu0 0
    %718 = vmatpush1.bf16.msra.mxu0 0
    %719 = vmatprep.subr.bf16.mxu0 0
    %720 = vmatpush1.bf16.msra.mxu0 0
    %721 = vmatprep.subr.bf16.mxu0 0
    %722 = vmatpush1.bf16.msra.mxu0 0
    %723 = vmatprep.subr.bf16.mxu0 0
    %724 = vmatpush1.bf16.msra.mxu0 0
    %725 = vmatprep.subr.bf16.mxu0 0
    %726 = vmatpush1.bf16.msra.mxu0 0
    %727 = vmatprep.subr.bf16.mxu0 0
    %728 = vmatpush1.bf16.msra.mxu0 0
    %729 = vmatprep.subr.bf16.mxu0 0
    %730 = vmatpush1.bf16.msra.mxu0 0
    %731 = vmatprep.subr.bf16.mxu0 0
    %732 = vmatpush1.bf16.msra.mxu0 0
    %733 = vmatprep.subr.bf16.mxu0 0
    %734 = vmatpush1.bf16.msra.mxu0 0
    %735 = vmatprep.subr.bf16.mxu0 0
    %736 = vmatpush1.bf16.msra.mxu0 0
    %737 = vmatprep.mubr.bf16.mxu0 0
    %738 = vmatmul.mubr.bf16.gmra.mrb[0].mxu0 %v585
    %v739 = vpop.f32.mrb[0].mxu0
    %v740 = vadd.f32 0.0, %v739
    %v741 = vpop.f32.mrb[0].mxu0
    %v742 = vpop.f32.mrb[0].mxu0
    %v743 = vpop.f32.mrb[0].mxu0
    %744 = vdwg.mxu0
    %v745 = vadd.f32 %v704, %v740
    %v746 = vxor.u32 %v745, 2147483648
    %v747 = vmul.f32 %v746, 1.442695
    %v748 = vpow.pop %v747
    %v749 = vadd.f32 %v748, 1.0
    %v750 = vrcp.pop %v749
    %v751 = vmul.f32 1.0, %v750
    %v752 = vtanh.pop %v745
    %v753 = vmul.f32 %v751, %v573
    %755 = vrot.lane.b32.xlu0 %v752, 64
    %v756 = vpop.permute.xlu0 %755
    %v758 = vmul.f32 %v751, %v756
    %760 = vrot.lane.b32.xlu0 %v758, 32
    %v761 = vpop.permute.xlu0 %760
    %v763 = vadd.f32 %v753, %v761
    %v764 = vtanh.pop %v763
    %766 = vrot.lane.b32.xlu0 %v764, 64
    %v767 = vpop.permute.xlu0 %766
    %v769 = vmul.f32 %v751, %v767
    %v770 = vpack.c.bf16 %v769, %v769
    %772 = vrot.lane.b32.xlu0 %v770, 32
    %v773 = vpop.permute.xlu0 %772
    %v775 = vsel %vm148, %v773, 0
    %777 = vmatprep.subr.bf16.mxu0 0
    %778 = vmatpush1.bf16.msra.mxu0 %v385
    %779 = vmatprep.subr.bf16.mxu0 0
    %780 = vmatpush1.bf16.msra.mxu0 %v386
    %781 = vmatprep.subr.bf16.mxu0 0
    %782 = vmatpush1.bf16.msra.mxu0 0
    %783 = vmatprep.subr.bf16.mxu0 0
    %784 = vmatpush1.bf16.msra.mxu0 0
    %785 = vmatprep.subr.bf16.mxu0 0
    %786 = vmatpush1.bf16.msra.mxu0 0
    %787 = vmatprep.subr.bf16.mxu0 0
    %788 = vmatpush1.bf16.msra.mxu0 0
    %789 = vmatprep.subr.bf16.mxu0 0
    %790 = vmatpush1.bf16.msra.mxu0 0
    %791 = vmatprep.subr.bf16.mxu0 0
    %792 = vmatpush1.bf16.msra.mxu0 0
    %793 = vmatprep.subr.bf16.mxu0 0
    %794 = vmatpush1.bf16.msra.mxu0 0
    %795 = vmatprep.subr.bf16.mxu0 0
    %796 = vmatpush1.bf16.msra.mxu0 0
    %797 = vmatprep.subr.bf16.mxu0 0
    %798 = vmatpush1.bf16.msra.mxu0 0
    %799 = vmatprep.subr.bf16.mxu0 0
    %800 = vmatpush1.bf16.msra.mxu0 0
    %801 = vmatprep.subr.bf16.mxu0 0
    %802 = vmatpush1.bf16.msra.mxu0 0
    %803 = vmatprep.subr.bf16.mxu0 0
    %804 = vmatpush1.bf16.msra.mxu0 0
    %805 = vmatprep.subr.bf16.mxu0 0
    %806 = vmatpush1.bf16.msra.mxu0 0
    %807 = vmatprep.subr.bf16.mxu0 0
    %808 = vmatpush1.bf16.msra.mxu0 0
    %809 = vmatprep.mubr.bf16.mxu0 0
    %810 = vmatmul.mubr.bf16.gmra.mrb[0].mxu0 %v775
    %v811 = vpop.f32.mrb[0].mxu0
    %v812 = vadd.f32 %v699, %v811
    %v813 = vpop.f32.mrb[0].mxu0
    %v814 = vpop.f32.mrb[0].mxu0
    %v815 = vpop.f32.mrb[0].mxu0
    %816 = vdwg.mxu0
    %v817 = vadd.f32 %v812, %v225
    %v818 = vxor.u32 %v817, 2147483648
    %v819 = vmul.f32 %v818, 1.442695
    %v820 = vpow.pop %v819
    %v821 = vadd.f32 %v820, 1.0
    %v822 = vrcp.pop %v821
    %v823 = vmul.f32 1.0, %v822
    %v824 = vtanh.pop %v817
    %v825 = vmul.f32 %v823, %v645
    %827 = vrot.lane.b32.xlu0 %v824, 64
    %v828 = vpop.permute.xlu0 %827
    %v830 = vmul.f32 %v823, %v828
    %832 = vrot.lane.b32.xlu0 %v830, 32
    %v833 = vpop.permute.xlu0 %832
    %v835 = vadd.f32 %v825, %v833
    %v836 = vtanh.pop %v835
    %838 = vrot.lane.b32.xlu0 %v836, 64
    %v839 = vpop.permute.xlu0 %838
    %v841 = vmul.f32 %v823, %v839
    %843 = vrot.lane.b32.xlu0 %v841, 32
    %v844 = vpop.permute.xlu0 %843
    %846 = vst.msk [vmem:[#allocation3 + $0x4] sm:$0x3] %vm465, %v844
    %v847 = vpack.c.bf16 %v841, %v841
    %849 = vrot.lane.b32.xlu0 %v847, 32
    %v850 = vpop.permute.xlu0 %849
    %v852 = vsel %vm148, %v850, 0
    %854 = vmatprep.subr.bf16.mxu0 0
    %855 = vmatpush1.bf16.msra.mxu0 %v240
    %856 = vmatprep.subr.bf16.mxu0 0
    %857 = vmatpush1.bf16.msra.mxu0 %v241
    %858 = vmatprep.subr.bf16.mxu0 0
    %859 = vmatpush1.bf16.msra.mxu0 0
    %860 = vmatprep.subr.bf16.mxu0 0
    %861 = vmatpush1.bf16.msra.mxu0 0
    %862 = vmatprep.subr.bf16.mxu0 0
    %863 = vmatpush1.bf16.msra.mxu0 0
    %864 = vmatprep.subr.bf16.mxu0 0
    %865 = vmatpush1.bf16.msra.mxu0 0
    %866 = vmatprep.subr.bf16.mxu0 0
    %867 = vmatpush1.bf16.msra.mxu0 0
    %868 = vmatprep.subr.bf16.mxu0 0
    %869 = vmatpush1.bf16.msra.mxu0 0
    %870 = vmatprep.subr.bf16.mxu0 0
    %871 = vmatpush1.bf16.msra.mxu0 0
    %872 = vmatprep.subr.bf16.mxu0 0
    %873 = vmatpush1.bf16.msra.mxu0 0
    %874 = vmatprep.subr.bf16.mxu0 0
    %875 = vmatpush1.bf16.msra.mxu0 0
    %876 = vmatprep.subr.bf16.mxu0 0
    %877 = vmatpush1.bf16.msra.mxu0 0
    %878 = vmatprep.subr.bf16.mxu0 0
    %879 = vmatpush1.bf16.msra.mxu0 0
    %880 = vmatprep.subr.bf16.mxu0 0
    %881 = vmatpush1.bf16.msra.mxu0 0
    %882 = vmatprep.subr.bf16.mxu0 0
    %883 = vmatpush1.bf16.msra.mxu0 0
    %884 = vmatprep.subr.bf16.mxu0 0
    %885 = vmatpush1.bf16.msra.mxu0 0
    %886 = vmatprep.mubr.bf16.mxu0 0
    %887 = vmatmul.mubr.bf16.gmra.mrb[0].mxu0 %v852
    %v888 = vpop.f32.mrb[0].mxu0
    %v889 = vadd.f32 0.0, %v888
    %v890 = vpop.f32.mrb[0].mxu0
    %v891 = vpop.f32.mrb[0].mxu0
    %v892 = vpop.f32.mrb[0].mxu0
    %893 = vdwg.mxu0
    %v894 = vld [vmem:[%s198] sm:$0x3]
    %895 = vmatprep.subr.bf16.mxu0 0
    %896 = vmatpush1.bf16.msra.mxu0 %v297
    %897 = vmatprep.subr.bf16.mxu0 0
    %898 = vmatpush1.bf16.msra.mxu0 %v298
    %899 = vmatprep.subr.bf16.mxu0 0
    %900 = vmatpush1.bf16.msra.mxu0 0
    %901 = vmatprep.subr.bf16.mxu0 0
    %902 = vmatpush1.bf16.msra.mxu0 0
    %903 = vmatprep.subr.bf16.mxu0 0
    %904 = vmatpush1.bf16.msra.mxu0 0
    %905 = vmatprep.subr.bf16.mxu0 0
    %906 = vmatpush1.bf16.msra.mxu0 0
    %907 = vmatprep.subr.bf16.mxu0 0
    %908 = vmatpush1.bf16.msra.mxu0 0
    %909 = vmatprep.subr.bf16.mxu0 0
    %910 = vmatpush1.bf16.msra.mxu0 0
    %911 = vmatprep.subr.bf16.mxu0 0
    %912 = vmatpush1.bf16.msra.mxu0 0
    %913 = vmatprep.subr.bf16.mxu0 0
    %914 = vmatpush1.bf16.msra.mxu0 0
    %915 = vmatprep.subr.bf16.mxu0 0
    %916 = vmatpush1.bf16.msra.mxu0 0
    %917 = vmatprep.subr.bf16.mxu0 0
    %918 = vmatpush1.bf16.msra.mxu0 0
    %919 = vmatprep.subr.bf16.mxu0 0
    %920 = vmatpush1.bf16.msra.mxu0 0
    %921 = vmatprep.subr.bf16.mxu0 0
    %922 = vmatpush1.bf16.msra.mxu0 0
    %923 = vmatprep.subr.bf16.mxu0 0
    %924 = vmatpush1.bf16.msra.mxu0 0
    %925 = vmatprep.subr.bf16.mxu0 0
    %926 = vmatpush1.bf16.msra.mxu0 0
    %927 = vmatprep.mubr.bf16.mxu0 0
    %928 = vmatmul.mubr.bf16.gmra.mrb[0].mxu0 %v775
    %v929 = vpop.f32.mrb[0].mxu0
    %v930 = vadd.f32 0.0, %v929
    %v931 = vpop.f32.mrb[0].mxu0
    %v932 = vpop.f32.mrb[0].mxu0
    %v933 = vpop.f32.mrb[0].mxu0
    %934 = vdwg.mxu0
    %v935 = vadd.f32 %v894, %v930
    %v936 = vxor.u32 %v935, 2147483648
    %v937 = vmul.f32 %v936, 1.442695
    %v938 = vpow.pop %v937
    %v939 = vadd.f32 %v938, 1.0
    %v940 = vrcp.pop %v939
    %v941 = vmul.f32 1.0, %v940
    %v942 = vtanh.pop %v935
    %v943 = vmul.f32 %v941, %v763
    %945 = vrot.lane.b32.xlu0 %v942, 64
    %v946 = vpop.permute.xlu0 %945
    %v948 = vmul.f32 %v941, %v946
    %950 = vrot.lane.b32.xlu0 %v948, 32
    %v951 = vpop.permute.xlu0 %950
    %v953 = vadd.f32 %v943, %v951
    %v954 = vtanh.pop %v953
    %956 = vrot.lane.b32.xlu0 %v954, 64
    %v957 = vpop.permute.xlu0 %956
    %v959 = vmul.f32 %v941, %v957
    %v960 = vpack.c.bf16 %v959, %v959
    %962 = vrot.lane.b32.xlu0 %v960, 32
    %v963 = vpop.permute.xlu0 %962
    %v965 = vsel %vm148, %v963, 0
    %967 = vmatprep.subr.bf16.mxu0 0
    %968 = vmatpush1.bf16.msra.mxu0 %v385
    %969 = vmatprep.subr.bf16.mxu0 0
    %970 = vmatpush1.bf16.msra.mxu0 %v386
    %971 = vmatprep.subr.bf16.mxu0 0
    %972 = vmatpush1.bf16.msra.mxu0 0
    %973 = vmatprep.subr.bf16.mxu0 0
    %974 = vmatpush1.bf16.msra.mxu0 0
    %975 = vmatprep.subr.bf16.mxu0 0
    %976 = vmatpush1.bf16.msra.mxu0 0
    %977 = vmatprep.subr.bf16.mxu0 0
    %978 = vmatpush1.bf16.msra.mxu0 0
    %979 = vmatprep.subr.bf16.mxu0 0
    %980 = vmatpush1.bf16.msra.mxu0 0
    %981 = vmatprep.subr.bf16.mxu0 0
    %982 = vmatpush1.bf16.msra.mxu0 0
    %983 = vmatprep.subr.bf16.mxu0 0
    %984 = vmatpush1.bf16.msra.mxu0 0
    %985 = vmatprep.subr.bf16.mxu0 0
    %986 = vmatpush1.bf16.msra.mxu0 0
    %987 = vmatprep.subr.bf16.mxu0 0
    %988 = vmatpush1.bf16.msra.mxu0 0
    %989 = vmatprep.subr.bf16.mxu0 0
    %990 = vmatpush1.bf16.msra.mxu0 0
    %991 = vmatprep.subr.bf16.mxu0 0
    %992 = vmatpush1.bf16.msra.mxu0 0
    %993 = vmatprep.subr.bf16.mxu0 0
    %994 = vmatpush1.bf16.msra.mxu0 0
    %995 = vmatprep.subr.bf16.mxu0 0
    %996 = vmatpush1.bf16.msra.mxu0 0
    %997 = vmatprep.subr.bf16.mxu0 0
    %998 = vmatpush1.bf16.msra.mxu0 0
    %999 = vmatprep.mubr.bf16.mxu0 0
    %1000 = vmatmul.mubr.bf16.gmra.mrb[0].mxu0 %v965
    %v1001 = vpop.f32.mrb[0].mxu0
    %v1002 = vadd.f32 %v889, %v1001
    %v1003 = vpop.f32.mrb[0].mxu0
    %v1004 = vpop.f32.mrb[0].mxu0
    %v1005 = vpop.f32.mrb[0].mxu0
    %1006 = vdwg.mxu0
    %v1007 = vadd.f32 %v1002, %v225
    %v1008 = vxor.u32 %v1007, 2147483648
    %v1009 = vmul.f32 %v1008, 1.442695
    %v1010 = vpow.pop %v1009
    %v1011 = vadd.f32 %v1010, 1.0
    %v1012 = vrcp.pop %v1011
    %v1013 = vmul.f32 1.0, %v1012
    %v1014 = vtanh.pop %v1007
    %v1015 = vmul.f32 %v1013, %v835
    %1017 = vrot.lane.b32.xlu0 %v1014, 64
    %v1018 = vpop.permute.xlu0 %1017
    %v1020 = vmul.f32 %v1013, %v1018
    %1022 = vrot.lane.b32.xlu0 %v1020, 32
    %v1023 = vpop.permute.xlu0 %1022
    %v1025 = vadd.f32 %v1015, %v1023
    %v1026 = vtanh.pop %v1025
    %1028 = vrot.lane.b32.xlu0 %v1026, 64
    %v1029 = vpop.permute.xlu0 %1028
    %v1031 = vmul.f32 %v1013, %v1029
    %1033 = vrot.lane.b32.xlu0 %v1031, 32
    %v1034 = vpop.permute.xlu0 %1033
    %1036 = vst.msk [vmem:[#allocation3 + $0x6] sm:$0x3] %vm465, %v1034
    %v1037 = vpack.c.bf16 %v1031, %v1031
    %1039 = vrot.lane.b32.xlu0 %v1037, 32
    %v1040 = vpop.permute.xlu0 %1039
    %v1042 = vsel %vm148, %v1040, 0
    %1044 = vmatprep.subr.bf16.mxu0 0
    %1045 = vmatpush1.bf16.msra.mxu0 %v240
    %1046 = vmatprep.subr.bf16.mxu0 0
    %1047 = vmatpush1.bf16.msra.mxu0 %v241
    %1048 = vmatprep.subr.bf16.mxu0 0
    %1049 = vmatpush1.bf16.msra.mxu0 0
    %1050 = vmatprep.subr.bf16.mxu0 0
    %1051 = vmatpush1.bf16.msra.mxu0 0
    %1052 = vmatprep.subr.bf16.mxu0 0
    %1053 = vmatpush1.bf16.msra.mxu0 0
    %1054 = vmatprep.subr.bf16.mxu0 0
    %1055 = vmatpush1.bf16.msra.mxu0 0
    %1056 = vmatprep.subr.bf16.mxu0 0
    %1057 = vmatpush1.bf16.msra.mxu0 0
    %1058 = vmatprep.subr.bf16.mxu0 0
    %1059 = vmatpush1.bf16.msra.mxu0 0
    %1060 = vmatprep.subr.bf16.mxu0 0
    %1061 = vmatpush1.bf16.msra.mxu0 0
    %1062 = vmatprep.subr.bf16.mxu0 0
    %1063 = vmatpush1.bf16.msra.mxu0 0
    %1064 = vmatprep.subr.bf16.mxu0 0
    %1065 = vmatpush1.bf16.msra.mxu0 0
    %1066 = vmatprep.subr.bf16.mxu0 0
    %1067 = vmatpush1.bf16.msra.mxu0 0
    %1068 = vmatprep.subr.bf16.mxu0 0
    %1069 = vmatpush1.bf16.msra.mxu0 0
    %1070 = vmatprep.subr.bf16.mxu0 0
    %1071 = vmatpush1.bf16.msra.mxu0 0
    %1072 = vmatprep.subr.bf16.mxu0 0
    %1073 = vmatpush1.bf16.msra.mxu0 0
    %1074 = vmatprep.subr.bf16.mxu0 0
    %1075 = vmatpush1.bf16.msra.mxu0 0
    %1076 = vmatprep.mubr.bf16.mxu0 0
    %1077 = vmatmul.mubr.bf16.gmra.mrb[0].mxu0 %v1042
    %v1078 = vpop.f32.mrb[0].mxu0
    %v1079 = vadd.f32 0.0, %v1078
    %v1080 = vpop.f32.mrb[0].mxu0
    %v1081 = vpop.f32.mrb[0].mxu0
    %v1082 = vpop.f32.mrb[0].mxu0
    %1083 = vdwg.mxu0
    %v1084 = vld [vmem:[%s200] sm:$0x3]
    %1085 = vmatprep.subr.bf16.mxu0 0
    %1086 = vmatpush1.bf16.msra.mxu0 %v297
    %1087 = vmatprep.subr.bf16.mxu0 0
    %1088 = vmatpush1.bf16.msra.mxu0 %v298
    %1089 = vmatprep.subr.bf16.mxu0 0
    %1090 = vmatpush1.bf16.msra.mxu0 0
    %1091 = vmatprep.subr.bf16.mxu0 0
    %1092 = vmatpush1.bf16.msra.mxu0 0
    %1093 = vmatprep.subr.bf16.mxu0 0
    %1094 = vmatpush1.bf16.msra.mxu0 0
    %1095 = vmatprep.subr.bf16.mxu0 0
    %1096 = vmatpush1.bf16.msra.mxu0 0
    %1097 = vmatprep.subr.bf16.mxu0 0
    %1098 = vmatpush1.bf16.msra.mxu0 0
    %1099 = vmatprep.subr.bf16.mxu0 0
    %1100 = vmatpush1.bf16.msra.mxu0 0
    %1101 = vmatprep.subr.bf16.mxu0 0
    %1102 = vmatpush1.bf16.msra.mxu0 0
    %1103 = vmatprep.subr.bf16.mxu0 0
    %1104 = vmatpush1.bf16.msra.mxu0 0
    %1105 = vmatprep.subr.bf16.mxu0 0
    %1106 = vmatpush1.bf16.msra.mxu0 0
    %1107 = vmatprep.subr.bf16.mxu0 0
    %1108 = vmatpush1.bf16.msra.mxu0 0
    %1109 = vmatprep.subr.bf16.mxu0 0
    %1110 = vmatpush1.bf16.msra.mxu0 0
    %1111 = vmatprep.subr.bf16.mxu0 0
    %1112 = vmatpush1.bf16.msra.mxu0 0
    %1113 = vmatprep.subr.bf16.mxu0 0
    %1114 = vmatpush1.bf16.msra.mxu0 0
    %1115 = vmatprep.subr.bf16.mxu0 0
    %1116 = vmatpush1.bf16.msra.mxu0 0
    %1117 = vmatprep.mubr.bf16.mxu0 0
    %1118 = vmatmul.mubr.bf16.gmra.mrb[0].mxu0 %v965
    %v1119 = vpop.f32.mrb[0].mxu0
    %v1120 = vadd.f32 0.0, %v1119
    %v1121 = vpop.f32.mrb[0].mxu0
    %v1122 = vpop.f32.mrb[0].mxu0
    %v1123 = vpop.f32.mrb[0].mxu0
    %1124 = vdwg.mxu0
    %v1125 = vadd.f32 %v1084, %v1120
    %v1126 = vxor.u32 %v1125, 2147483648
    %v1127 = vmul.f32 %v1126, 1.442695
    %v1128 = vpow.pop %v1127
    %v1129 = vadd.f32 %v1128, 1.0
    %v1130 = vrcp.pop %v1129
    %v1131 = vmul.f32 1.0, %v1130
    %v1132 = vtanh.pop %v1125
    %v1133 = vmul.f32 %v1131, %v953
    %1135 = vrot.lane.b32.xlu0 %v1132, 64
    %v1136 = vpop.permute.xlu0 %1135
    %v1138 = vmul.f32 %v1131, %v1136
    %1140 = vrot.lane.b32.xlu0 %v1138, 32
    %v1141 = vpop.permute.xlu0 %1140
    %v1143 = vadd.f32 %v1133, %v1141
    %v1144 = vtanh.pop %v1143
    %1146 = vrot.lane.b32.xlu0 %v1144, 64
    %v1147 = vpop.permute.xlu0 %1146
    %v1149 = vmul.f32 %v1131, %v1147
    %v1150 = vpack.c.bf16 %v1149, %v1149
    %1152 = vrot.lane.b32.xlu0 %v1150, 32
    %v1153 = vpop.permute.xlu0 %1152
    %v1155 = vsel %vm148, %v1153, 0
    %1157 = vmatprep.subr.bf16.mxu0 0
    %1158 = vmatpush1.bf16.msra.mxu0 %v385
    %1159 = vmatprep.subr.bf16.mxu0 0
    %1160 = vmatpush1.bf16.msra.mxu0 %v386
    %1161 = vmatprep.subr.bf16.mxu0 0
    %1162 = vmatpush1.bf16.msra.mxu0 0
    %1163 = vmatprep.subr.bf16.mxu0 0
    %1164 = vmatpush1.bf16.msra.mxu0 0
    %1165 = vmatprep.subr.bf16.mxu0 0
    %1166 = vmatpush1.bf16.msra.mxu0 0
    %1167 = vmatprep.subr.bf16.mxu0 0
    %1168 = vmatpush1.bf16.msra.mxu0 0
    %1169 = vmatprep.subr.bf16.mxu0 0
    %1170 = vmatpush1.bf16.msra.mxu0 0
    %1171 = vmatprep.subr.bf16.mxu0 0
    %1172 = vmatpush1.bf16.msra.mxu0 0
    %1173 = vmatprep.subr.bf16.mxu0 0
    %1174 = vmatpush1.bf16.msra.mxu0 0
    %1175 = vmatprep.subr.bf16.mxu0 0
    %1176 = vmatpush1.bf16.msra.mxu0 0
    %1177 = vmatprep.subr.bf16.mxu0 0
    %1178 = vmatpush1.bf16.msra.mxu0 0
    %1179 = vmatprep.subr.bf16.mxu0 0
    %1180 = vmatpush1.bf16.msra.mxu0 0
    %1181 = vmatprep.subr.bf16.mxu0 0
    %1182 = vmatpush1.bf16.msra.mxu0 0
    %1183 = vmatprep.subr.bf16.mxu0 0
    %1184 = vmatpush1.bf16.msra.mxu0 0
    %1185 = vmatprep.subr.bf16.mxu0 0
    %1186 = vmatpush1.bf16.msra.mxu0 0
    %1187 = vmatprep.subr.bf16.mxu0 0
    %1188 = vmatpush1.bf16.msra.mxu0 0
    %1189 = vmatprep.mubr.bf16.mxu0 0
    %1190 = vmatmul.mubr.bf16.gmra.mrb[0].mxu0 %v1155
    %v1191 = vpop.f32.mrb[0].mxu0
    %v1192 = vadd.f32 %v1079, %v1191
    %v1193 = vpop.f32.mrb[0].mxu0
    %v1194 = vpop.f32.mrb[0].mxu0
    %v1195 = vpop.f32.mrb[0].mxu0
    %1196 = vdwg.mxu0
    %v1197 = vadd.f32 %v1192, %v225
    %v1198 = vxor.u32 %v1197, 2147483648
    %v1199 = vmul.f32 %v1198, 1.442695
    %v1200 = vpow.pop %v1199
    %v1201 = vadd.f32 %v1200, 1.0
    %v1202 = vrcp.pop %v1201
    %v1203 = vmul.f32 1.0, %v1202
    %v1204 = vtanh.pop %v1197
    %v1205 = vmul.f32 %v1203, %v1025
    %1207 = vrot.lane.b32.xlu0 %v1204, 64
    %v1208 = vpop.permute.xlu0 %1207
    %v1210 = vmul.f32 %v1203, %v1208
    %1212 = vrot.lane.b32.xlu0 %v1210, 32
    %v1213 = vpop.permute.xlu0 %1212
    %v1215 = vadd.f32 %v1205, %v1213
    %v1216 = vtanh.pop %v1215
    %1218 = vrot.lane.b32.xlu0 %v1216, 64
    %v1219 = vpop.permute.xlu0 %1218
    %v1221 = vmul.f32 %v1203, %v1219
    %1223 = vrot.lane.b32.xlu0 %v1221, 32
    %v1224 = vpop.permute.xlu0 %1223
    %1226 = vst.msk [vmem:[#allocation3 + $0x8] sm:$0x3] %vm465, %v1224
    %v1227 = vpack.c.bf16 %v1221, %v1221
    %1229 = vrot.lane.b32.xlu0 %v1227, 32
    %v1230 = vpop.permute.xlu0 %1229
    %v1232 = vsel %vm148, %v1230, 0
    %1234 = vmatprep.subr.bf16.mxu0 0
    %1235 = vmatpush1.bf16.msra.mxu0 %v240
    %1236 = vmatprep.subr.bf16.mxu0 0
    %1237 = vmatpush1.bf16.msra.mxu0 %v241
    %1238 = vmatprep.subr.bf16.mxu0 0
    %1239 = vmatpush1.bf16.msra.mxu0 0
    %1240 = vmatprep.subr.bf16.mxu0 0
    %1241 = vmatpush1.bf16.msra.mxu0 0
    %1242 = vmatprep.subr.bf16.mxu0 0
    %1243 = vmatpush1.bf16.msra.mxu0 0
    %1244 = vmatprep.subr.bf16.mxu0 0
    %1245 = vmatpush1.bf16.msra.mxu0 0
    %1246 = vmatprep.subr.bf16.mxu0 0
    %1247 = vmatpush1.bf16.msra.mxu0 0
    %1248 = vmatprep.subr.bf16.mxu0 0
    %1249 = vmatpush1.bf16.msra.mxu0 0
    %1250 = vmatprep.subr.bf16.mxu0 0
    %1251 = vmatpush1.bf16.msra.mxu0 0
    %1252 = vmatprep.subr.bf16.mxu0 0
    %1253 = vmatpush1.bf16.msra.mxu0 0
    %1254 = vmatprep.subr.bf16.mxu0 0
    %1255 = vmatpush1.bf16.msra.mxu0 0
    %1256 = vmatprep.subr.bf16.mxu0 0
    %1257 = vmatpush1.bf16.msra.mxu0 0
    %1258 = vmatprep.subr.bf16.mxu0 0
    %1259 = vmatpush1.bf16.msra.mxu0 0
    %1260 = vmatprep.subr.bf16.mxu0 0
    %1261 = vmatpush1.bf16.msra.mxu0 0
    %1262 = vmatprep.subr.bf16.mxu0 0
    %1263 = vmatpush1.bf16.msra.mxu0 0
    %1264 = vmatprep.subr.bf16.mxu0 0
    %1265 = vmatpush1.bf16.msra.mxu0 0
    %1266 = vmatprep.mubr.bf16.mxu0 0
    %1267 = vmatmul.mubr.bf16.gmra.mrb[0].mxu0 %v1232
    %v1268 = vpop.f32.mrb[0].mxu0
    %v1269 = vadd.f32 0.0, %v1268
    %v1270 = vpop.f32.mrb[0].mxu0
    %v1271 = vpop.f32.mrb[0].mxu0
    %v1272 = vpop.f32.mrb[0].mxu0
    %1273 = vdwg.mxu0
    %v1274 = vld [vmem:[%s202] sm:$0x3]
    %1275 = vmatprep.subr.bf16.mxu0 0
    %1276 = vmatpush1.bf16.msra.mxu0 %v297
    %1277 = vmatprep.subr.bf16.mxu0 0
    %1278 = vmatpush1.bf16.msra.mxu0 %v298
    %1279 = vmatprep.subr.bf16.mxu0 0
    %1280 = vmatpush1.bf16.msra.mxu0 0
    %1281 = vmatprep.subr.bf16.mxu0 0
    %1282 = vmatpush1.bf16.msra.mxu0 0
    %1283 = vmatprep.subr.bf16.mxu0 0
    %1284 = vmatpush1.bf16.msra.mxu0 0
    %1285 = vmatprep.subr.bf16.mxu0 0
    %1286 = vmatpush1.bf16.msra.mxu0 0
    %1287 = vmatprep.subr.bf16.mxu0 0
    %1288 = vmatpush1.bf16.msra.mxu0 0
    %1289 = vmatprep.subr.bf16.mxu0 0
    %1290 = vmatpush1.bf16.msra.mxu0 0
    %1291 = vmatprep.subr.bf16.mxu0 0
    %1292 = vmatpush1.bf16.msra.mxu0 0
    %1293 = vmatprep.subr.bf16.mxu0 0
    %1294 = vmatpush1.bf16.msra.mxu0 0
    %1295 = vmatprep.subr.bf16.mxu0 0
    %1296 = vmatpush1.bf16.msra.mxu0 0
    %1297 = vmatprep.subr.bf16.mxu0 0
    %1298 = vmatpush1.bf16.msra.mxu0 0
    %1299 = vmatprep.subr.bf16.mxu0 0
    %1300 = vmatpush1.bf16.msra.mxu0 0
    %1301 = vmatprep.subr.bf16.mxu0 0
    %1302 = vmatpush1.bf16.msra.mxu0 0
    %1303 = vmatprep.subr.bf16.mxu0 0
    %1304 = vmatpush1.bf16.msra.mxu0 0
    %1305 = vmatprep.subr.bf16.mxu0 0
    %1306 = vmatpush1.bf16.msra.mxu0 0
    %1307 = vmatprep.mubr.bf16.mxu0 0
    %1308 = vmatmul.mubr.bf16.gmra.mrb[0].mxu0 %v1155
    %v1309 = vpop.f32.mrb[0].mxu0
    %v1310 = vadd.f32 0.0, %v1309
    %v1311 = vpop.f32.mrb[0].mxu0
    %v1312 = vpop.f32.mrb[0].mxu0
    %v1313 = vpop.f32.mrb[0].mxu0
    %1314 = vdwg.mxu0
    %v1315 = vadd.f32 %v1274, %v1310
    %v1316 = vxor.u32 %v1315, 2147483648
    %v1317 = vmul.f32 %v1316, 1.442695
    %v1318 = vpow.pop %v1317
    %v1319 = vadd.f32 %v1318, 1.0
    %v1320 = vrcp.pop %v1319
    %v1321 = vmul.f32 1.0, %v1320
    %v1322 = vtanh.pop %v1315
    %v1323 = vmul.f32 %v1321, %v1143
    %1325 = vrot.lane.b32.xlu0 %v1322, 64
    %v1326 = vpop.permute.xlu0 %1325
    %v1328 = vmul.f32 %v1321, %v1326
    %1330 = vrot.lane.b32.xlu0 %v1328, 32
    %v1331 = vpop.permute.xlu0 %1330
    %v1333 = vadd.f32 %v1323, %v1331
    %v1334 = vtanh.pop %v1333
    %1336 = vrot.lane.b32.xlu0 %v1334, 64
    %v1337 = vpop.permute.xlu0 %1336
    %v1339 = vmul.f32 %v1321, %v1337
    %v1340 = vpack.c.bf16 %v1339, %v1339
    %1342 = vrot.lane.b32.xlu0 %v1340, 32
    %v1343 = vpop.permute.xlu0 %1342
    %v1345 = vsel %vm148, %v1343, 0
    %1347 = vmatprep.subr.bf16.mxu0 0
    %1348 = vmatpush1.bf16.msra.mxu0 %v385
    %1349 = vmatprep.subr.bf16.mxu0 0
    %1350 = vmatpush1.bf16.msra.mxu0 %v386
    %1351 = vmatprep.subr.bf16.mxu0 0
    %1352 = vmatpush1.bf16.msra.mxu0 0
    %1353 = vmatprep.subr.bf16.mxu0 0
    %1354 = vmatpush1.bf16.msra.mxu0 0
    %1355 = vmatprep.subr.bf16.mxu0 0
    %1356 = vmatpush1.bf16.msra.mxu0 0
    %1357 = vmatprep.subr.bf16.mxu0 0
    %1358 = vmatpush1.bf16.msra.mxu0 0
    %1359 = vmatprep.subr.bf16.mxu0 0
    %1360 = vmatpush1.bf16.msra.mxu0 0
    %1361 = vmatprep.subr.bf16.mxu0 0
    %1362 = vmatpush1.bf16.msra.mxu0 0
    %1363 = vmatprep.subr.bf16.mxu0 0
    %1364 = vmatpush1.bf16.msra.mxu0 0
    %1365 = vmatprep.subr.bf16.mxu0 0
    %1366 = vmatpush1.bf16.msra.mxu0 0
    %1367 = vmatprep.subr.bf16.mxu0 0
    %1368 = vmatpush1.bf16.msra.mxu0 0
    %1369 = vmatprep.subr.bf16.mxu0 0
    %1370 = vmatpush1.bf16.msra.mxu0 0
    %1371 = vmatprep.subr.bf16.mxu0 0
    %1372 = vmatpush1.bf16.msra.mxu0 0
    %1373 = vmatprep.subr.bf16.mxu0 0
    %1374 = vmatpush1.bf16.msra.mxu0 0
    %1375 = vmatprep.subr.bf16.mxu0 0
    %1376 = vmatpush1.bf16.msra.mxu0 0
    %1377 = vmatprep.subr.bf16.mxu0 0
    %1378 = vmatpush1.bf16.msra.mxu0 0
    %1379 = vmatprep.mubr.bf16.mxu0 0
    %1380 = vmatmul.mubr.bf16.gmra.mrb[0].mxu0 %v1345
    %v1381 = vpop.f32.mrb[0].mxu0
    %v1382 = vadd.f32 %v1269, %v1381
    %v1383 = vpop.f32.mrb[0].mxu0
    %v1384 = vpop.f32.mrb[0].mxu0
    %v1385 = vpop.f32.mrb[0].mxu0
    %1386 = vdwg.mxu0
    %v1387 = vadd.f32 %v1382, %v225
    %v1388 = vxor.u32 %v1387, 2147483648
    %v1389 = vmul.f32 %v1388, 1.442695
    %v1390 = vpow.pop %v1389
    %v1391 = vadd.f32 %v1390, 1.0
    %v1392 = vrcp.pop %v1391
    %v1393 = vmul.f32 1.0, %v1392
    %v1394 = vtanh.pop %v1387
    %v1395 = vmul.f32 %v1393, %v1215
    %1397 = vrot.lane.b32.xlu0 %v1394, 64
    %v1398 = vpop.permute.xlu0 %1397
    %v1400 = vmul.f32 %v1393, %v1398
    %1402 = vrot.lane.b32.xlu0 %v1400, 32
    %v1403 = vpop.permute.xlu0 %1402
    %v1405 = vadd.f32 %v1395, %v1403
    %v1406 = vtanh.pop %v1405
    %1408 = vrot.lane.b32.xlu0 %v1406, 64
    %v1409 = vpop.permute.xlu0 %1408
    %v1411 = vmul.f32 %v1393, %v1409
    %1413 = vrot.lane.b32.xlu0 %v1411, 32
    %v1414 = vpop.permute.xlu0 %1413
    %1416 = vst.msk [vmem:[#allocation3 + $0xa] sm:$0x3] %vm465, %v1414
    %v1417 = vpack.c.bf16 %v1411, %v1411
    %1419 = vrot.lane.b32.xlu0 %v1417, 32
    %v1420 = vpop.permute.xlu0 %1419
    %v1422 = vsel %vm148, %v1420, 0
    %1424 = vmatprep.subr.bf16.mxu0 0
    %1425 = vmatpush1.bf16.msra.mxu0 %v240
    %1426 = vmatprep.subr.bf16.mxu0 0
    %1427 = vmatpush1.bf16.msra.mxu0 %v241
    %1428 = vmatprep.subr.bf16.mxu0 0
    %1429 = vmatpush1.bf16.msra.mxu0 0
    %1430 = vmatprep.subr.bf16.mxu0 0
    %1431 = vmatpush1.bf16.msra.mxu0 0
    %1432 = vmatprep.subr.bf16.mxu0 0
    %1433 = vmatpush1.bf16.msra.mxu0 0
    %1434 = vmatprep.subr.bf16.mxu0 0
    %1435 = vmatpush1.bf16.msra.mxu0 0
    %1436 = vmatprep.subr.bf16.mxu0 0
    %1437 = vmatpush1.bf16.msra.mxu0 0
    %1438 = vmatprep.subr.bf16.mxu0 0
    %1439 = vmatpush1.bf16.msra.mxu0 0
    %1440 = vmatprep.subr.bf16.mxu0 0
    %1441 = vmatpush1.bf16.msra.mxu0 0
    %1442 = vmatprep.subr.bf16.mxu0 0
    %1443 = vmatpush1.bf16.msra.mxu0 0
    %1444 = vmatprep.subr.bf16.mxu0 0
    %1445 = vmatpush1.bf16.msra.mxu0 0
    %1446 = vmatprep.subr.bf16.mxu0 0
    %1447 = vmatpush1.bf16.msra.mxu0 0
    %1448 = vmatprep.subr.bf16.mxu0 0
    %1449 = vmatpush1.bf16.msra.mxu0 0
    %1450 = vmatprep.subr.bf16.mxu0 0
    %1451 = vmatpush1.bf16.msra.mxu0 0
    %1452 = vmatprep.subr.bf16.mxu0 0
    %1453 = vmatpush1.bf16.msra.mxu0 0
    %1454 = vmatprep.subr.bf16.mxu0 0
    %1455 = vmatpush1.bf16.msra.mxu0 0
    %1456 = vmatprep.mubr.bf16.mxu0 0
    %1457 = vmatmul.mubr.bf16.gmra.mrb[0].mxu0 %v1422
    %v1458 = vpop.f32.mrb[0].mxu0
    %v1459 = vadd.f32 0.0, %v1458
    %v1460 = vpop.f32.mrb[0].mxu0
    %v1461 = vpop.f32.mrb[0].mxu0
    %v1462 = vpop.f32.mrb[0].mxu0
    %1463 = vdwg.mxu0
    %v1464 = vld [vmem:[%s204] sm:$0x3]
    %1465 = vmatprep.subr.bf16.mxu0 0
    %1466 = vmatpush1.bf16.msra.mxu0 %v297
    %1467 = vmatprep.subr.bf16.mxu0 0
    %1468 = vmatpush1.bf16.msra.mxu0 %v298
    %1469 = vmatprep.subr.bf16.mxu0 0
    %1470 = vmatpush1.bf16.msra.mxu0 0
    %1471 = vmatprep.subr.bf16.mxu0 0
    %1472 = vmatpush1.bf16.msra.mxu0 0
    %1473 = vmatprep.subr.bf16.mxu0 0
    %1474 = vmatpush1.bf16.msra.mxu0 0
    %1475 = vmatprep.subr.bf16.mxu0 0
    %1476 = vmatpush1.bf16.msra.mxu0 0
    %1477 = vmatprep.subr.bf16.mxu0 0
    %1478 = vmatpush1.bf16.msra.mxu0 0
    %1479 = vmatprep.subr.bf16.mxu0 0
    %1480 = vmatpush1.bf16.msra.mxu0 0
    %1481 = vmatprep.subr.bf16.mxu0 0
    %1482 = vmatpush1.bf16.msra.mxu0 0
    %1483 = vmatprep.subr.bf16.mxu0 0
    %1484 = vmatpush1.bf16.msra.mxu0 0
    %1485 = vmatprep.subr.bf16.mxu0 0
    %1486 = vmatpush1.bf16.msra.mxu0 0
    %1487 = vmatprep.subr.bf16.mxu0 0
    %1488 = vmatpush1.bf16.msra.mxu0 0
    %1489 = vmatprep.subr.bf16.mxu0 0
    %1490 = vmatpush1.bf16.msra.mxu0 0
    %1491 = vmatprep.subr.bf16.mxu0 0
    %1492 = vmatpush1.bf16.msra.mxu0 0
    %1493 = vmatprep.subr.bf16.mxu0 0
    %1494 = vmatpush1.bf16.msra.mxu0 0
    %1495 = vmatprep.subr.bf16.mxu0 0
    %1496 = vmatpush1.bf16.msra.mxu0 0
    %1497 = vmatprep.mubr.bf16.mxu0 0
    %1498 = vmatmul.mubr.bf16.gmra.mrb[0].mxu0 %v1345
    %v1499 = vpop.f32.mrb[0].mxu0
    %v1500 = vadd.f32 0.0, %v1499
    %v1501 = vpop.f32.mrb[0].mxu0
    %v1502 = vpop.f32.mrb[0].mxu0
    %v1503 = vpop.f32.mrb[0].mxu0
    %1504 = vdwg.mxu0
    %v1505 = vadd.f32 %v1464, %v1500
    %v1506 = vxor.u32 %v1505, 2147483648
    %v1507 = vmul.f32 %v1506, 1.442695
    %v1508 = vpow.pop %v1507
    %v1509 = vadd.f32 %v1508, 1.0
    %v1510 = vrcp.pop %v1509
    %v1511 = vmul.f32 1.0, %v1510
    %v1512 = vtanh.pop %v1505
    %v1513 = vmul.f32 %v1511, %v1333
    %1515 = vrot.lane.b32.xlu0 %v1512, 64
    %v1516 = vpop.permute.xlu0 %1515
    %v1518 = vmul.f32 %v1511, %v1516
    %1520 = vrot.lane.b32.xlu0 %v1518, 32
    %v1521 = vpop.permute.xlu0 %1520
    %v1523 = vadd.f32 %v1513, %v1521
    %v1524 = vtanh.pop %v1523
    %1526 = vrot.lane.b32.xlu0 %v1524, 64
    %v1527 = vpop.permute.xlu0 %1526
    %v1529 = vmul.f32 %v1511, %v1527
    %v1530 = vpack.c.bf16 %v1529, %v1529
    %1532 = vrot.lane.b32.xlu0 %v1530, 32
    %v1533 = vpop.permute.xlu0 %1532
    %v1535 = vsel %vm148, %v1533, 0
    %1537 = vmatprep.subr.bf16.mxu0 0
    %1538 = vmatpush1.bf16.msra.mxu0 %v385
    %1539 = vmatprep.subr.bf16.mxu0 0
    %1540 = vmatpush1.bf16.msra.mxu0 %v386
    %1541 = vmatprep.subr.bf16.mxu0 0
    %1542 = vmatpush1.bf16.msra.mxu0 0
    %1543 = vmatprep.subr.bf16.mxu0 0
    %1544 = vmatpush1.bf16.msra.mxu0 0
    %1545 = vmatprep.subr.bf16.mxu0 0
    %1546 = vmatpush1.bf16.msra.mxu0 0
    %1547 = vmatprep.subr.bf16.mxu0 0
    %1548 = vmatpush1.bf16.msra.mxu0 0
    %1549 = vmatprep.subr.bf16.mxu0 0
    %1550 = vmatpush1.bf16.msra.mxu0 0
    %1551 = vmatprep.subr.bf16.mxu0 0
    %1552 = vmatpush1.bf16.msra.mxu0 0
    %1553 = vmatprep.subr.bf16.mxu0 0
    %1554 = vmatpush1.bf16.msra.mxu0 0
    %1555 = vmatprep.subr.bf16.mxu0 0
    %1556 = vmatpush1.bf16.msra.mxu0 0
    %1557 = vmatprep.subr.bf16.mxu0 0
    %1558 = vmatpush1.bf16.msra.mxu0 0
    %1559 = vmatprep.subr.bf16.mxu0 0
    %1560 = vmatpush1.bf16.msra.mxu0 0
    %1561 = vmatprep.subr.bf16.mxu0 0
    %1562 = vmatpush1.bf16.msra.mxu0 0
    %1563 = vmatprep.subr.bf16.mxu0 0
    %1564 = vmatpush1.bf16.msra.mxu0 0
    %1565 = vmatprep.subr.bf16.mxu0 0
    %1566 = vmatpush1.bf16.msra.mxu0 0
    %1567 = vmatprep.subr.bf16.mxu0 0
    %1568 = vmatpush1.bf16.msra.mxu0 0
    %1569 = vmatprep.mubr.bf16.mxu0 0
    %1570 = vmatmul.mubr.bf16.gmra.mrb[0].mxu0 %v1535
    %v1571 = vpop.f32.mrb[0].mxu0
    %v1572 = vadd.f32 %v1459, %v1571
    %v1573 = vpop.f32.mrb[0].mxu0
    %v1574 = vpop.f32.mrb[0].mxu0
    %v1575 = vpop.f32.mrb[0].mxu0
    %1576 = vdwg.mxu0
    %v1577 = vadd.f32 %v1572, %v225
    %v1578 = vxor.u32 %v1577, 2147483648
    %v1579 = vmul.f32 %v1578, 1.442695
    %v1580 = vpow.pop %v1579
    %v1581 = vadd.f32 %v1580, 1.0
    %v1582 = vrcp.pop %v1581
    %v1583 = vmul.f32 1.0, %v1582
    %v1584 = vtanh.pop %v1577
    %v1585 = vmul.f32 %v1583, %v1405
    %1587 = vrot.lane.b32.xlu0 %v1584, 64
    %v1588 = vpop.permute.xlu0 %1587
    %v1590 = vmul.f32 %v1583, %v1588
    %1592 = vrot.lane.b32.xlu0 %v1590, 32
    %v1593 = vpop.permute.xlu0 %1592
    %v1595 = vadd.f32 %v1585, %v1593
    %v1596 = vtanh.pop %v1595
    %1598 = vrot.lane.b32.xlu0 %v1596, 64
    %v1599 = vpop.permute.xlu0 %1598
    %v1601 = vmul.f32 %v1583, %v1599
    %1603 = vrot.lane.b32.xlu0 %v1601, 32
    %v1604 = vpop.permute.xlu0 %1603
    %1606 = vst.msk [vmem:[#allocation3 + $0xc] sm:$0x3] %vm465, %v1604
    %v1607 = vpack.c.bf16 %v1601, %v1601
    %1609 = vrot.lane.b32.xlu0 %v1607, 32
    %v1610 = vpop.permute.xlu0 %1609
    %v1612 = vsel %vm148, %v1610, 0
    %1614 = vmatprep.subr.bf16.mxu0 0
    %1615 = vmatpush1.bf16.msra.mxu0 %v240
    %1616 = vmatprep.subr.bf16.mxu0 0
    %1617 = vmatpush1.bf16.msra.mxu0 %v241
    %1618 = vmatprep.subr.bf16.mxu0 0
    %1619 = vmatpush1.bf16.msra.mxu0 0
    %1620 = vmatprep.subr.bf16.mxu0 0
    %1621 = vmatpush1.bf16.msra.mxu0 0
    %1622 = vmatprep.subr.bf16.mxu0 0
    %1623 = vmatpush1.bf16.msra.mxu0 0
    %1624 = vmatprep.subr.bf16.mxu0 0
    %1625 = vmatpush1.bf16.msra.mxu0 0
    %1626 = vmatprep.subr.bf16.mxu0 0
    %1627 = vmatpush1.bf16.msra.mxu0 0
    %1628 = vmatprep.subr.bf16.mxu0 0
    %1629 = vmatpush1.bf16.msra.mxu0 0
    %1630 = vmatprep.subr.bf16.mxu0 0
    %1631 = vmatpush1.bf16.msra.mxu0 0
    %1632 = vmatprep.subr.bf16.mxu0 0
    %1633 = vmatpush1.bf16.msra.mxu0 0
    %1634 = vmatprep.subr.bf16.mxu0 0
    %1635 = vmatpush1.bf16.msra.mxu0 0
    %1636 = vmatprep.subr.bf16.mxu0 0
    %1637 = vmatpush1.bf16.msra.mxu0 0
    %1638 = vmatprep.subr.bf16.mxu0 0
    %1639 = vmatpush1.bf16.msra.mxu0 0
    %1640 = vmatprep.subr.bf16.mxu0 0
    %1641 = vmatpush1.bf16.msra.mxu0 0
    %1642 = vmatprep.subr.bf16.mxu0 0
    %1643 = vmatpush1.bf16.msra.mxu0 0
    %1644 = vmatprep.subr.bf16.mxu0 0
    %1645 = vmatpush1.bf16.msra.mxu0 0
    %1646 = vmatprep.mubr.bf16.mxu0 0
    %1647 = vmatmul.mubr.bf16.gmra.mrb[0].mxu0 %v1612
    %v1648 = vpop.f32.mrb[0].mxu0
    %v1649 = vadd.f32 0.0, %v1648
    %v1650 = vpop.f32.mrb[0].mxu0
    %v1651 = vpop.f32.mrb[0].mxu0
    %v1652 = vpop.f32.mrb[0].mxu0
    %1653 = vdwg.mxu0
    %v1654 = vld [vmem:[%s206] sm:$0x3]
    %1655 = vmatprep.subr.bf16.mxu0 0
    %1656 = vmatpush1.bf16.msra.mxu0 %v297
    %1657 = vmatprep.subr.bf16.mxu0 0
    %1658 = vmatpush1.bf16.msra.mxu0 %v298
    %1659 = vmatprep.subr.bf16.mxu0 0
    %1660 = vmatpush1.bf16.msra.mxu0 0
    %1661 = vmatprep.subr.bf16.mxu0 0
    %1662 = vmatpush1.bf16.msra.mxu0 0
    %1663 = vmatprep.subr.bf16.mxu0 0
    %1664 = vmatpush1.bf16.msra.mxu0 0
    %1665 = vmatprep.subr.bf16.mxu0 0
    %1666 = vmatpush1.bf16.msra.mxu0 0
    %1667 = vmatprep.subr.bf16.mxu0 0
    %1668 = vmatpush1.bf16.msra.mxu0 0
    %1669 = vmatprep.subr.bf16.mxu0 0
    %1670 = vmatpush1.bf16.msra.mxu0 0
    %1671 = vmatprep.subr.bf16.mxu0 0
    %1672 = vmatpush1.bf16.msra.mxu0 0
    %1673 = vmatprep.subr.bf16.mxu0 0
    %1674 = vmatpush1.bf16.msra.mxu0 0
    %1675 = vmatprep.subr.bf16.mxu0 0
    %1676 = vmatpush1.bf16.msra.mxu0 0
    %1677 = vmatprep.subr.bf16.mxu0 0
    %1678 = vmatpush1.bf16.msra.mxu0 0
    %1679 = vmatprep.subr.bf16.mxu0 0
    %1680 = vmatpush1.bf16.msra.mxu0 0
    %1681 = vmatprep.subr.bf16.mxu0 0
    %1682 = vmatpush1.bf16.msra.mxu0 0
    %1683 = vmatprep.subr.bf16.mxu0 0
    %1684 = vmatpush1.bf16.msra.mxu0 0
    %1685 = vmatprep.subr.bf16.mxu0 0
    %1686 = vmatpush1.bf16.msra.mxu0 0
    %1687 = vmatprep.mubr.bf16.mxu0 0
    %1688 = vmatmul.mubr.bf16.gmra.mrb[0].mxu0 %v1535
    %v1689 = vpop.f32.mrb[0].mxu0
    %v1690 = vadd.f32 0.0, %v1689
    %v1691 = vpop.f32.mrb[0].mxu0
    %v1692 = vpop.f32.mrb[0].mxu0
    %v1693 = vpop.f32.mrb[0].mxu0
    %1694 = vdwg.mxu0
    %v1695 = vadd.f32 %v1654, %v1690
    %v1696 = vxor.u32 %v1695, 2147483648
    %v1697 = vmul.f32 %v1696, 1.442695
    %v1698 = vpow.pop %v1697
    %v1699 = vadd.f32 %v1698, 1.0
    %v1700 = vrcp.pop %v1699
    %v1701 = vmul.f32 1.0, %v1700
    %v1702 = vtanh.pop %v1695
    %v1703 = vmul.f32 %v1701, %v1523
    %1705 = vrot.lane.b32.xlu0 %v1702, 64
    %v1706 = vpop.permute.xlu0 %1705
    %v1708 = vmul.f32 %v1701, %v1706
    %1710 = vrot.lane.b32.xlu0 %v1708, 32
    %v1711 = vpop.permute.xlu0 %1710
    %v1713 = vadd.f32 %v1703, %v1711
    %v1714 = vtanh.pop %v1713
    %1716 = vrot.lane.b32.xlu0 %v1714, 64
    %v1717 = vpop.permute.xlu0 %1716
    %v1719 = vmul.f32 %v1701, %v1717
    %v1720 = vpack.c.bf16 %v1719, %v1719
    %1722 = vrot.lane.b32.xlu0 %v1720, 32
    %v1723 = vpop.permute.xlu0 %1722
    %v1725 = vsel %vm148, %v1723, 0
    %1727 = vmatprep.subr.bf16.mxu0 0
    %1728 = vmatpush1.bf16.msra.mxu0 %v385
    %1729 = vmatprep.subr.bf16.mxu0 0
    %1730 = vmatpush1.bf16.msra.mxu0 %v386
    %1731 = vmatprep.subr.bf16.mxu0 0
    %1732 = vmatpush1.bf16.msra.mxu0 0
    %1733 = vmatprep.subr.bf16.mxu0 0
    %1734 = vmatpush1.bf16.msra.mxu0 0
    %1735 = vmatprep.subr.bf16.mxu0 0
    %1736 = vmatpush1.bf16.msra.mxu0 0
    %1737 = vmatprep.subr.bf16.mxu0 0
    %1738 = vmatpush1.bf16.msra.mxu0 0
    %1739 = vmatprep.subr.bf16.mxu0 0
    %1740 = vmatpush1.bf16.msra.mxu0 0
    %1741 = vmatprep.subr.bf16.mxu0 0
    %1742 = vmatpush1.bf16.msra.mxu0 0
    %1743 = vmatprep.subr.bf16.mxu0 0
    %1744 = vmatpush1.bf16.msra.mxu0 0
    %1745 = vmatprep.subr.bf16.mxu0 0
    %1746 = vmatpush1.bf16.msra.mxu0 0
    %1747 = vmatprep.subr.bf16.mxu0 0
    %1748 = vmatpush1.bf16.msra.mxu0 0
    %1749 = vmatprep.subr.bf16.mxu0 0
    %1750 = vmatpush1.bf16.msra.mxu0 0
    %1751 = vmatprep.subr.bf16.mxu0 0
    %1752 = vmatpush1.bf16.msra.mxu0 0
    %1753 = vmatprep.subr.bf16.mxu0 0
    %1754 = vmatpush1.bf16.msra.mxu0 0
    %1755 = vmatprep.subr.bf16.mxu0 0
    %1756 = vmatpush1.bf16.msra.mxu0 0
    %1757 = vmatprep.subr.bf16.mxu0 0
    %1758 = vmatpush1.bf16.msra.mxu0 0
    %1759 = vmatprep.mubr.bf16.mxu0 0
    %1760 = vmatmul.mubr.bf16.gmra.mrb[0].mxu0 %v1725
    %v1761 = vpop.f32.mrb[0].mxu0
    %v1762 = vadd.f32 %v1649, %v1761
    %v1763 = vpop.f32.mrb[0].mxu0
    %v1764 = vpop.f32.mrb[0].mxu0
    %v1765 = vpop.f32.mrb[0].mxu0
    %1766 = vdwg.mxu0
    %v1767 = vadd.f32 %v1762, %v225
    %v1768 = vxor.u32 %v1767, 2147483648
    %v1769 = vmul.f32 %v1768, 1.442695
    %v1770 = vpow.pop %v1769
    %v1771 = vadd.f32 %v1770, 1.0
    %v1772 = vrcp.pop %v1771
    %v1773 = vmul.f32 1.0, %v1772
    %v1774 = vtanh.pop %v1767
    %v1775 = vmul.f32 %v1773, %v1595
    %1777 = vrot.lane.b32.xlu0 %v1774, 64
    %v1778 = vpop.permute.xlu0 %1777
    %v1780 = vmul.f32 %v1773, %v1778
    %1782 = vrot.lane.b32.xlu0 %v1780, 32
    %v1783 = vpop.permute.xlu0 %1782
    %v1785 = vadd.f32 %v1775, %v1783
    %v1786 = vtanh.pop %v1785
    %1788 = vrot.lane.b32.xlu0 %v1786, 64
    %v1789 = vpop.permute.xlu0 %1788
    %v1791 = vmul.f32 %v1773, %v1789
    %1793 = vrot.lane.b32.xlu0 %v1791, 32
    %v1794 = vpop.permute.xlu0 %1793
    %1796 = vst.msk [vmem:[#allocation3 + $0xe] sm:$0x3] %vm465, %v1794
    %v1797 = vld [vmem:[#allocation3] sm:$0xff]
    %v1798 = vld [vmem:[#allocation3 + $0x8] sm:$0xff]
    %v1799 = vpack.c.bf16 %v1798, %v1797
    %v1800 = vld [vmem:[%s13] sm:$0xf]
    %v1801 = vld [vmem:[%s13 + $0x4] sm:$0xf]
    %v1802 = vld [vmem:[%s13 + $0x8] sm:$0xf]
    %v1803 = vld [vmem:[%s13 + $0xc] sm:$0xf]
    %v1804 = vld [vmem:[%s14] sm:$0x1]
    %v1806 = vlaneseq
    %v1807 = vshrl.u32 %v1806, 7
    %v1808 = vsub.s32 0, %v1807
    %v1809 = vrot.slane %v1804, %v1808
    %v1815 = vunpack.c.l.b16 %v1800
    %v1816 = vunpack.c.l.b16 %v1801
    %v1817 = vunpack.c.l.b16 %v1802
    %v1818 = vunpack.c.l.b16 %v1803
    %v1819 = vpack.c.b16 %v1816, %v1815
    %v1820 = vpack.c.b16 %v1818, %v1817
    %v1824 = vsel %vm148, %v1799, 0
    %1826 = vmatprep.subr.bf16.mxu0 0
    %1827 = vmatpush1.bf16.msra.mxu0 %v1819
    %1828 = vmatprep.subr.bf16.mxu0 0
    %1829 = vmatpush1.bf16.msra.mxu0 %v1820
    %1830 = vmatprep.subr.bf16.mxu0 0
    %1831 = vmatpush1.bf16.msra.mxu0 0
    %1832 = vmatprep.subr.bf16.mxu0 0
    %1833 = vmatpush1.bf16.msra.mxu0 0
    %1834 = vmatprep.subr.bf16.mxu0 0
    %1835 = vmatpush1.bf16.msra.mxu0 0
    %1836 = vmatprep.subr.bf16.mxu0 0
    %1837 = vmatpush1.bf16.msra.mxu0 0
    %1838 = vmatprep.subr.bf16.mxu0 0
    %1839 = vmatpush1.bf16.msra.mxu0 0
    %1840 = vmatprep.subr.bf16.mxu0 0
    %1841 = vmatpush1.bf16.msra.mxu0 0
    %1842 = vmatprep.subr.bf16.mxu0 0
    %1843 = vmatpush1.bf16.msra.mxu0 0
    %1844 = vmatprep.subr.bf16.mxu0 0
    %1845 = vmatpush1.bf16.msra.mxu0 0
    %1846 = vmatprep.subr.bf16.mxu0 0
    %1847 = vmatpush1.bf16.msra.mxu0 0
    %1848 = vmatprep.subr.bf16.mxu0 0
    %1849 = vmatpush1.bf16.msra.mxu0 0
    %1850 = vmatprep.subr.bf16.mxu0 0
    %1851 = vmatpush1.bf16.msra.mxu0 0
    %1852 = vmatprep.subr.bf16.mxu0 0
    %1853 = vmatpush1.bf16.msra.mxu0 0
    %1854 = vmatprep.subr.bf16.mxu0 0
    %1855 = vmatpush1.bf16.msra.mxu0 0
    %1856 = vmatprep.subr.bf16.mxu0 0
    %1857 = vmatpush1.bf16.msra.mxu0 0
    %1858 = vmatprep.mubr.bf16.mxu0 0
    %1859 = vmatmul.mubr.bf16.gmra.mrb[0].mxu0 %v1824
    %v1860 = vpop.f32.mrb[0].mxu0
    %v1861 = vadd.f32 %v1809, %v1860
    %v1862 = vpop.f32.mrb[0].mxu0
    %v1863 = vpop.f32.mrb[0].mxu0
    %v1864 = vadd.f32 %v1809, %v1863
    %v1865 = vpop.f32.mrb[0].mxu0
    %1866 = vdwg.mxu0
    %1867 = vst [vmem:[#allocation4] sm:$0xff] %v1861
    %1868 = vst [vmem:[#allocation4 + $0x8] sm:$0xff] %v1864
    %1870 = vrot.lane.b32.xlu0 %v1719, 32
    %v1871 = vpop.permute.xlu0 %1870
    %1873 = vst.msk [vmem:[%s16] sm:$0x3] %vm465, %v1871
    %1875 = vrot.lane.b32.xlu0 %v1713, 96
    %v1876 = vpop.permute.xlu0 %1875
    %1878 = vst.msk [vmem:[%s17] sm:$0x3] %vm465, %v1876
    %1879 = vst.msk [vmem:[%s18] sm:$0x3] %vm465, %v1794
    %1881 = vrot.lane.b32.xlu0 %v1785, 96
    %v1882 = vpop.permute.xlu0 %1881
    %1884 = vst.msk [vmem:[%s19] sm:$0x3] %vm465, %v1882
    // Predicated region
    $region62: #{custom_rnn_forward.1} parent=1 // pred_check
      _
    $region63: #{custom_rnn_forward.1} parent=1 // pred_check_branch
      %1886 = sbr.rel (0) target = $region65
    $region64: #{custom_rnn_forward.1} parent=1 // pred_region
      %s1888 = ssub.s32 256, 256
      %1889 = vsyncadd [#allocation5], %s1888
      %s1890 = sshll.u32 [#allocation4], 4
      %s1891 = int_to_ptr.vmem [resolvable:$true] %s1890
      %1896 = dma.vmem_to_hbm [thread:$0]  %s1891, 256, %s15, [#allocation5], 128, 128, 8
    $region65: #{custom_rnn_forward.1} parent=1 // pred_fallthru
      _
    // Predicated region
    $region66: #{custom_rnn_forward.1} parent=1 // pred_check
      _
    $region67: #{custom_rnn_forward.1} parent=1 // pred_check_branch
      %1898 = sbr.rel (0) target = $region69
    $region68: #{custom_rnn_forward.1} parent=1 // pred_region
      _
    $region69: #{custom_rnn_forward.1} parent=1 // pred_fallthru
      _
    // Predicated region
    $region70: #{custom_rnn_forward.1} parent=1 // pred_check
      _
    $region71: #{custom_rnn_forward.1} parent=1 // pred_check_branch
      %1900 = sbr.rel (0) target = $region73
    $region72: #{custom_rnn_forward.1} parent=1 // pred_region
      _
    $region73: #{custom_rnn_forward.1} parent=1 // pred_fallthru
      _
    // Predicated region
    $region74: #{custom_rnn_forward.1} parent=1 // pred_check
      _
    $region75: #{custom_rnn_forward.1} parent=1 // pred_check_branch
      %1902 = sbr.rel (0) target = $region77
    $region76: #{custom_rnn_forward.1} parent=1 // pred_region
      _
    $region77: #{custom_rnn_forward.1} parent=1 // pred_fallthru
      _
    // Predicated region
    $region78: #{custom_rnn_forward.1} parent=1 // pred_check
      _
    $region79: #{custom_rnn_forward.1} parent=1 // pred_check_branch
      %1904 = sbr.rel (0) target = $region81
    $region80: #{custom_rnn_forward.1} parent=1 // pred_region
      _
    $region81: #{custom_rnn_forward.1} parent=1 // pred_fallthru
      _
    // Predicated region
    $region82: #{custom_rnn_forward.1} parent=1 // pred_check
      _
    $region83: #{custom_rnn_forward.1} parent=1 // pred_check_branch
      %1906 = sbr.rel (0) target = $region85
    $region84: #{custom_rnn_forward.1} parent=1 // pred_region
      %1907 = dma.done [#allocation5], 256
    $region85: #{custom_rnn_forward.1} parent=1 // pred_fallthru
      _
    // Predicated region
    $region86: #{custom_rnn_forward.1} parent=1 // pred_check
      _
    $region87: #{custom_rnn_forward.1} parent=1 // pred_check_branch
      %1909 = sbr.rel (0) target = $region89
    $region88: #{custom_rnn_forward.1} parent=1 // pred_region
      _
    $region89: #{custom_rnn_forward.1} parent=1 // pred_fallthru
      _
    // Predicated region
    $region90: #{custom_rnn_forward.1} parent=1 // pred_check
      _
    $region91: #{custom_rnn_forward.1} parent=1 // pred_check_branch
      %1911 = sbr.rel (0) target = $region93
    $region92: #{custom_rnn_forward.1} parent=1 // pred_region
      _
    $region93: #{custom_rnn_forward.1} parent=1 // pred_fallthru
      _
    // Predicated region
    $region94: #{custom_rnn_forward.1} parent=1 // pred_check
      _
    $region95: #{custom_rnn_forward.1} parent=1 // pred_check_branch
      %1913 = sbr.rel (0) target = $region97
    $region96: #{custom_rnn_forward.1} parent=1 // pred_region
      _
    $region97: #{custom_rnn_forward.1} parent=1 // pred_fallthru
      _
    // Predicated region
    $region98: #{custom_rnn_forward.1} parent=1 // pred_check
      _
    $region99: #{custom_rnn_forward.1} parent=1 // pred_check_branch
      %1915 = sbr.rel (0) target = $region101
    $region100: #{custom_rnn_forward.1} parent=1 // pred_region
      _
    $region101: #{custom_rnn_forward.1} parent=1 // pred_fallthru
      _
    %1916 = vsyncpa [#allocation5], 1

</llo_original>
